<compile_context>
chip_gen: v7x
topology: tpu7x:2x2x1
jax: 0.10.0
libtpu: 0.0.40
codegen_flags: <defaults>
</compile_context>

<pallas_src>
import math
import functools

import jax
import jax.numpy as jnp
from jax import lax
from jax.experimental import pallas as pl
from jax.experimental.pallas import tpu as pltpu


def _mha_kernel(q_ref, k_ref, v_ref, mask_ref,
                wq_ref, bq_ref, wk_ref, bk_ref,
                wv_ref, bv_ref, wo_ref, bo_ref,
                out_ref, acc_ref, *, G: int, d_k: int, compute_dtype,
                approx_recip: bool):
    g = pl.program_id(2)                 # head-group index (reduction axis)
    cd = compute_dtype
    scale = jnp.float32(1.0 / math.sqrt(d_k))

    @pl.when(g == 0)
    def _init():
        acc_ref[...] = jnp.zeros_like(acc_ref)

    # Activations already in compute_dtype (cast once in the wrapper).
    x_q = q_ref[0]                       # (tq, D)
    x_k = k_ref[0]                       # (S, D)
    x_v = v_ref[0]                       # (S, D)
    m = mask_ref[0, 0]                   # (tq, S), caller's dtype

    # Resident weights; dynamic leading-dim index selects the current group.
    wq = wq_ref[g]                       # (D, gd)   pre-transposed, per-group
    wk = wk_ref[g]                       # (D, gd)
    wv = wv_ref[g]                       # (D, gd)
    wo = wo_ref[g]                       # (gd, D)   pre-transposed, per-group
    bq = bq_ref[g]                       # (1, gd)   f32
    bk = bk_ref[g]
    bv = bv_ref[g]

    # Group-wide projections: full MXU lane width (N = G*d_k), f32 accumulate.
    qh = jnp.dot(x_q, wq, preferred_element_type=jnp.float32) + bq      # (tq, gd)
    kh = jnp.dot(x_k, wk, preferred_element_type=jnp.float32) + bk      # (S, gd)
    vh = jnp.dot(x_v, wv, preferred_element_type=jnp.float32) + bv      # (S, gd)
    qh = qh * scale          # scale folded into q (cheaper than scaling scores)

    # Per-head attention within the group, statically unrolled over G.
    head_outs = []
    for gg in range(G):
        lo = gg * d_k
        q_g = qh[:, lo:lo + d_k].astype(cd)                              # (tq, d_k)
        k_g = kh[:, lo:lo + d_k].astype(cd)                              # (S, d_k)
        v_g = vh[:, lo:lo + d_k].astype(cd)                              # (S, d_k)

        # scores = q_g @ k_g.T (contract dim 1 of both; no materialized transpose)
        s = lax.dot_general(q_g, k_g, (((1,), (1,)), ((), ())),
                            preferred_element_type=jnp.float32)          # (tq, S)
        # masked_fill_(mask == 0, 1e-09) -- faithful to the PyTorch module.
        s = jnp.where(m == 0, jnp.float32(1e-09), s)
        # Numerically stable softmax (f32 math on all chips).
        s = s - jnp.max(s, axis=-1, keepdims=True)
        e = jnp.exp(s)
        denom = jnp.sum(e, axis=-1, keepdims=True)
        if approx_recip:
            p = e * pl.reciprocal(denom, approx=True)   # EUP slot, bf16 path
        else:
            p = e / denom                               # exact, f32 path
        head_outs.append(jnp.dot(p.astype(cd), v_g,
                                 preferred_element_type=jnp.float32))    # (tq, d_k)

    head_concat = jnp.concatenate(head_outs, axis=1).astype(cd)          # (tq, gd)

    # One gd-deep output-projection matmul and one accumulator RMW per step.
    acc_ref[...] += jnp.dot(head_concat, wo,
                            preferred_element_type=jnp.float32)          # (tq, D)

    @pl.when(g == pl.num_programs(2) - 1)
    def _finish():
        out_ref[0] = (acc_ref[...] + bo_ref[...]).astype(out_ref.dtype)


def _pick_head_group(h: int, d_k: int, lane_target: int = 128) -> int:
    """Smallest divisor G of h such that G*d_k >= min(lane_target, h*d_k)."""
    want = min(lane_target, h * d_k)
    for G in range(1, h + 1):
        if h % G == 0 and G * d_k >= want:
            return G
    return h


def _pick_q_tile(S: int, max_tile: int = 256) -> int:
    """Largest query tile <= max_tile that divides S and is a multiple of 8."""
    if S <= max_tile:
        return S
    for t in range(max_tile, 7, -1):
        if S % t == 0 and t % 8 == 0:
            return t
    return S


def multihead_attention_block(Q, K, V, mask, params, h: int, *,
                              compute_dtype=jnp.bfloat16,
                              q_tile=None,
                              lane_target=128,
                              vmem_limit_bytes=None):
    """Fused MHA forward.

    Q/K/V: (B, S, D); mask: (B, 1, S, S) with 0 = masked (any dtype; pass
    bool/int8 to minimize mask bandwidth -- no per-call conversion is done).
    """
    B, S, D = Q.shape
    assert D % h == 0, "d_model must be divisible by num of heads"
    d_k = D // h
    orig_dtype = Q.dtype
    wq, bq, wk, bk, wv, bv, wo, bo = params   # torch layout: W (out, in), b (1, out)

    # ---- tiling choices ------------------------------------------------------
    G = _pick_head_group(h, d_k, lane_target)          # heads per grid step
    gd = G * d_k                                       # per-step head width
    ng = h // G                                        # head groups (reduction)
    tq = q_tile if q_tile is not None else _pick_q_tile(S)
    assert S % tq == 0, "q_tile must divide the sequence length"
    nq = S // tq

    # ---- one-time layout prep (wrapper side) ---------------------------------
    # Cast activations to compute_dtype ONCE here (not per head-iteration).
    Qc = Q.astype(compute_dtype)
    Kc = K.astype(compute_dtype)
    Vc = V.astype(compute_dtype)

    def grouped_in(w):
        # (out=D, in=D) -> (ng, in=D, gd): column j of group g == output g*gd+j.
        return jnp.transpose(w.reshape(ng, gd, D), (0, 2, 1)).astype(compute_dtype)

    wq_g, wk_g, wv_g = grouped_in(wq), grouped_in(wk), grouped_in(wv)
    wo_g = jnp.transpose(wo, (1, 0)).reshape(ng, gd, D).astype(compute_dtype)
    bq_g = bq.reshape(ng, 1, gd).astype(jnp.float32)
    bk_g = bk.reshape(ng, 1, gd).astype(jnp.float32)
    bv_g = bv.reshape(ng, 1, gd).astype(jnp.float32)
    bo_f = bo.astype(jnp.float32)

    approx_recip = jnp.dtype(compute_dtype) != jnp.dtype(jnp.float32)
    kernel = functools.partial(_mha_kernel, G=G, d_k=d_k,
                               compute_dtype=compute_dtype,
                               approx_recip=bool(approx_recip))

    # ---- block specs ----------------------------------------------------------
    q_spec = pl.BlockSpec((1, tq, D), lambda b, qi, g: (b, qi, 0))
    kv_spec = pl.BlockSpec((1, S, D), lambda b, qi, g: (b, 0, 0))
    mask_spec = pl.BlockSpec((1, 1, tq, S), lambda b, qi, g: (b, 0, qi, 0))
    # Weights / biases: full-array blocks, constant index map -> VMEM resident.
    w_in_spec = pl.BlockSpec((ng, D, gd), lambda b, qi, g: (0, 0, 0))
    b_in_spec = pl.BlockSpec((ng, 1, gd), lambda b, qi, g: (0, 0, 0))
    w_out_spec = pl.BlockSpec((ng, gd, D), lambda b, qi, g: (0, 0, 0))
    b_out_spec = pl.BlockSpec((1, D), lambda b, qi, g: (0, 0))
    out_spec = pl.BlockSpec((1, tq, D), lambda b, qi, g: (b, qi, 0))

    # ---- VMEM budget ----------------------------------------------------------
    cd_b = jnp.dtype(compute_dtype).itemsize
    est = (
        2 * tq * D * cd_b                         # Q block (double-buffered)
        + 2 * 2 * S * D * cd_b                    # K, V blocks
        + 2 * tq * S * jnp.dtype(mask.dtype).itemsize   # mask block
        + 2 * tq * D * jnp.dtype(orig_dtype).itemsize   # output block
        + 4 * D * D * cd_b                        # resident Wq/Wk/Wv/Wo
        + 4 * D * 4                               # resident biases (f32)
        + tq * D * 4                              # f32 accumulator scratch
        + 6 * tq * S * 4                          # scores/exp/probs headroom
        + 3 * (tq + 2 * S) * gd * 4               # projection intermediates
        + (4 << 20)                               # misc headroom
    )
    if vmem_limit_bytes is None:
        # TODO(synk): at very large shapes on v7x (64 MiB physical VMEM) pass a
        # tighter explicit limit; v5e/v6e (128 MiB) can go up to ~100 MiB.
        vmem_limit_bytes = int(min(max(est, 32 << 20), 56 << 20))

    return pl.pallas_call(
        kernel,
        out_shape=jax.ShapeDtypeStruct((B, S, D), orig_dtype),
        grid_spec=pltpu.PrefetchScalarGridSpec(
            num_scalar_prefetch=0,
            grid=(B, nq, ng),        # batch & query-tile parallel, groups = reduction
            in_specs=[q_spec, kv_spec, kv_spec, mask_spec,
                      w_in_spec, b_in_spec, w_in_spec, b_in_spec,
                      w_in_spec, b_in_spec, w_out_spec, b_out_spec],
            out_specs=out_spec,
            scratch_shapes=[pltpu.VMEM((tq, D), jnp.float32)],
        ),
        compiler_params=pltpu.CompilerParams(
            dimension_semantics=("parallel", "parallel", "arbitrary"),
            vmem_limit_bytes=vmem_limit_bytes,
        ),
    )(Qc, Kc, Vc, mask, wq_g, bq_g, wk_g, bk_g, wv_g, bv_g, wo_g, bo_f)


def _reference(Q, K, V, mask, params, h):
    """Pure-JAX reference mirroring the PyTorch forward, for validation."""
    wq, bq, wk, bk, wv, bv, wo, bo = params
    B, S, D = Q.shape
    d_k = D // h

    def proj(x, w, b):
        return x @ w.T + b

    def split(x):
        return x.reshape(B, S, h, d_k).transpose(0, 2, 1, 3)

    qp, kp, vp = split(proj(Q, wq, bq)), split(proj(K, wk, bk)), split(proj(V, wv, bv))
    scores = jnp.einsum("bhqd,bhkd->bhqk", qp, kp) / math.sqrt(d_k)
    scores = jnp.where(mask == 0, 1e-09, scores)
    probs = jax.nn.softmax(scores, axis=-1)
    x = jnp.einsum("bhqk,bhkd->bhqd", probs, vp)
    x = x.transpose(0, 2, 1, 3).reshape(B, S, D)
    return x @ wo.T + bo


def _init_linear(key, d_model):
    # PyTorch nn.Linear default init: U(-1/sqrt(in), 1/sqrt(in))
    kw, kb = jax.random.split(key)
    bound = 1.0 / math.sqrt(d_model)
    w = jax.random.uniform(kw, (d_model, d_model), jnp.float32, -bound, bound)
    b = jax.random.uniform(kb, (1, d_model), jnp.float32, -bound, bound)
    return w, b


if __name__ == "__main__":
    B, S, d_model, h = 2, 8, 32, 4

    key = jax.random.PRNGKey(0)
    kq, kk, kv, ko, kQ, kK, kV = jax.random.split(key, 7)

    wq, bq = _init_linear(kq, d_model)
    wk, bk = _init_linear(kk, d_model)
    wv, bv = _init_linear(kv, d_model)
    wo, bo = _init_linear(ko, d_model)
    params = (wq, bq, wk, bk, wv, bv, wo, bo)

    Q = jax.random.normal(kQ, (B, S, d_model), jnp.float32)
    K = jax.random.normal(kK, (B, S, d_model), jnp.float32)
    V = jax.random.normal(kV, (B, S, d_model), jnp.float32)
    # Causal mask, broadcast over heads: (B, 1, S, S), 0 = masked.
    mask = jnp.broadcast_to(jnp.tril(jnp.ones((S, S), jnp.float32)), (B, 1, S, S))

    ref = _reference(Q, K, V, mask, params, h)

    # f32 compute path (strict-accuracy validation): exact reciprocal, tight check.
    out_f32 = jax.block_until_ready(
        multihead_attention_block(Q, K, V, mask, params, h,
                                  compute_dtype=jnp.float32))
    assert out_f32.shape == (B, S, d_model)
    assert jnp.allclose(out_f32, ref, atol=2e-3, rtol=2e-3), "f32 path mismatch"

    # bf16 MXU-input path (recommended default on v5e/v6e/v7x): loosened tolerance.
    out_bf16 = jax.block_until_ready(
        multihead_attention_block(Q, K, V, mask, params, h))
    assert out_bf16.shape == (B, S, d_model)
    assert jnp.allclose(out_bf16, ref, atol=5e-2, rtol=5e-2), "bf16 path mismatch"

    print("KERNEL_OK")
</pallas_src>

<mosaic_0001>
module attributes {stable_mosaic.version = 11 : i64} {
  func.func @_mha_kernel(%arg0: i32, %arg1: i32, %arg2: i32, %arg3: memref<1x8x32xf32, #tpu.memory_space<vmem>>, %arg4: memref<1x8x32xf32, #tpu.memory_space<vmem>>, %arg5: memref<1x8x32xf32, #tpu.memory_space<vmem>>, %arg6: memref<1x1x8x8xf32, #tpu.memory_space<vmem>>, %arg7: memref<1x32x32xf32, #tpu.memory_space<vmem>>, %arg8: memref<1x1x32xf32, #tpu.memory_space<vmem>>, %arg9: memref<1x32x32xf32, #tpu.memory_space<vmem>>, %arg10: memref<1x1x32xf32, #tpu.memory_space<vmem>>, %arg11: memref<1x32x32xf32, #tpu.memory_space<vmem>>, %arg12: memref<1x1x32xf32, #tpu.memory_space<vmem>>, %arg13: memref<1x32x32xf32, #tpu.memory_space<vmem>>, %arg14: memref<1x32xf32, #tpu.memory_space<vmem>>, %arg15: memref<1x8x32xf32, #tpu.memory_space<vmem>>, %arg16: memref<8x32xf32, #tpu.memory_space<vmem>>) attributes {dimension_semantics = [#tpu.dimension_semantics<parallel>, #tpu.dimension_semantics<parallel>, #tpu.dimension_semantics<arbitrary>], iteration_bounds = array<i64: 2, 1, 1>, scalar_prefetch = 0 : i64, scratch_operands = 1 : i64, tpu.core_type = #tpu.core_type<tc>, window_params = [{transform_indices = @transform_0, window_bounds = array<i64: 1, 8, 32>}, {transform_indices = @transform_1, window_bounds = array<i64: 1, 8, 32>}, {transform_indices = @transform_2, window_bounds = array<i64: 1, 8, 32>}, {transform_indices = @transform_3, window_bounds = array<i64: 1, 1, 8, 8>}, {pipeline_mode = #tpu.pipeline_mode<synchronous>, transform_indices = @transform_4, window_bounds = array<i64: 1, 32, 32>}, {pipeline_mode = #tpu.pipeline_mode<synchronous>, transform_indices = @transform_5, window_bounds = array<i64: 1, 1, 32>}, {pipeline_mode = #tpu.pipeline_mode<synchronous>, transform_indices = @transform_6, window_bounds = array<i64: 1, 32, 32>}, {pipeline_mode = #tpu.pipeline_mode<synchronous>, transform_indices = @transform_7, window_bounds = array<i64: 1, 1, 32>}, {pipeline_mode = #tpu.pipeline_mode<synchronous>, transform_indices = @transform_8, window_bounds = array<i64: 1, 32, 32>}, {pipeline_mode = #tpu.pipeline_mode<synchronous>, transform_indices = @transform_9, window_bounds = array<i64: 1, 1, 32>}, {pipeline_mode = #tpu.pipeline_mode<synchronous>, transform_indices = @transform_10, window_bounds = array<i64: 1, 32, 32>}, {pipeline_mode = #tpu.pipeline_mode<synchronous>, transform_indices = @transform_11, window_bounds = array<i64: 1, 32>}, {transform_indices = @transform_12, window_bounds = array<i64: 1, 8, 32>}]} {
    %c0_i32 = arith.constant 0 : i32
    %0 = arith.cmpi eq, %arg2, %c0_i32 : i32
    %1 = arith.extui %0 : i1 to i32
    %c0_i32_0 = arith.constant 0 : i32
    %2 = arith.cmpi ne, %1, %c0_i32_0 : i32
    scf.if %2 {
      %cst_61 = arith.constant 0.000000e+00 : f32
      %123 = vector.broadcast %cst_61 : f32 to vector<8x32xf32>
      %c0_62 = arith.constant 0 : index
      %c0_63 = arith.constant 0 : index
      %124 = vector.load %arg16[%c0_62, %c0_63] : memref<8x32xf32, #tpu.memory_space<vmem>>, vector<8x32xf32>
      tpu.vector_store %arg16[%c0_62, %c0_63], %123 {strides = array<i32>} : memref<8x32xf32, #tpu.memory_space<vmem>>, vector<8x32xf32>,
    } else {
    }
    %c0 = arith.constant 0 : index
    %c0_1 = arith.constant 0 : index
    %c0_2 = arith.constant 0 : index
    %3 = vector.load %arg3[%c0, %c0_1, %c0_2] : memref<1x8x32xf32, #tpu.memory_space<vmem>>, vector<1x8x32xf32>
    %4 = vector.shape_cast %3 : vector<1x8x32xf32> to vector<8x32xf32>
    %c0_3 = arith.constant 0 : index
    %c0_4 = arith.constant 0 : index
    %c0_5 = arith.constant 0 : index
    %5 = vector.load %arg4[%c0_3, %c0_4, %c0_5] : memref<1x8x32xf32, #tpu.memory_space<vmem>>, vector<1x8x32xf32>
    %6 = vector.shape_cast %5 : vector<1x8x32xf32> to vector<8x32xf32>
    %c0_6 = arith.constant 0 : index
    %c0_7 = arith.constant 0 : index
    %c0_8 = arith.constant 0 : index
    %7 = vector.load %arg5[%c0_6, %c0_7, %c0_8] : memref<1x8x32xf32, #tpu.memory_space<vmem>>, vector<1x8x32xf32>
    %8 = vector.shape_cast %7 : vector<1x8x32xf32> to vector<8x32xf32>
    %c0_9 = arith.constant 0 : index
    %c0_10 = arith.constant 0 : index
    %c0_11 = arith.constant 0 : index
    %c0_12 = arith.constant 0 : index
    %9 = vector.load %arg6[%c0_9, %c0_10, %c0_11, %c0_12] : memref<1x1x8x8xf32, #tpu.memory_space<vmem>>, vector<1x1x8x8xf32>
    %10 = vector.shape_cast %9 : vector<1x1x8x8xf32> to vector<8x8xf32>
    %11 = arith.index_cast %arg2 : i32 to index
    %c0_13 = arith.constant 0 : index
    %c0_14 = arith.constant 0 : index
    %12 = vector.load %arg7[%11, %c0_13, %c0_14] : memref<1x32x32xf32, #tpu.memory_space<vmem>>, vector<1x32x32xf32>
    %13 = vector.shape_cast %12 : vector<1x32x32xf32> to vector<32x32xf32>
    %14 = arith.index_cast %arg2 : i32 to index
    %c0_15 = arith.constant 0 : index
    %c0_16 = arith.constant 0 : index
    %15 = vector.load %arg9[%14, %c0_15, %c0_16] : memref<1x32x32xf32, #tpu.memory_space<vmem>>, vector<1x32x32xf32>
    %16 = vector.shape_cast %15 : vector<1x32x32xf32> to vector<32x32xf32>
    %17 = arith.index_cast %arg2 : i32 to index
    %c0_17 = arith.constant 0 : index
    %c0_18 = arith.constant 0 : index
    %18 = vector.load %arg11[%17, %c0_17, %c0_18] : memref<1x32x32xf32, #tpu.memory_space<vmem>>, vector<1x32x32xf32>
    %19 = vector.shape_cast %18 : vector<1x32x32xf32> to vector<32x32xf32>
    %20 = arith.index_cast %arg2 : i32 to index
    %c0_19 = arith.constant 0 : index
    %c0_20 = arith.constant 0 : index
    %21 = vector.load %arg13[%20, %c0_19, %c0_20] : memref<1x32x32xf32, #tpu.memory_space<vmem>>, vector<1x32x32xf32>
    %22 = vector.shape_cast %21 : vector<1x32x32xf32> to vector<32x32xf32>
    %23 = arith.index_cast %arg2 : i32 to index
    %c0_21 = arith.constant 0 : index
    %c0_22 = arith.constant 0 : index
    %24 = vector.load %arg8[%23, %c0_21, %c0_22] : memref<1x1x32xf32, #tpu.memory_space<vmem>>, vector<1x1x32xf32>
    %25 = vector.shape_cast %24 : vector<1x1x32xf32> to vector<1x32xf32>
    %26 = arith.index_cast %arg2 : i32 to index
    %c0_23 = arith.constant 0 : index
    %c0_24 = arith.constant 0 : index
    %27 = vector.load %arg10[%26, %c0_23, %c0_24] : memref<1x1x32xf32, #tpu.memory_space<vmem>>, vector<1x1x32xf32>
    %28 = vector.shape_cast %27 : vector<1x1x32xf32> to vector<1x32xf32>
    %29 = arith.index_cast %arg2 : i32 to index
    %c0_25 = arith.constant 0 : index
    %c0_26 = arith.constant 0 : index
    %30 = vector.load %arg12[%29, %c0_25, %c0_26] : memref<1x1x32xf32, #tpu.memory_space<vmem>>, vector<1x1x32xf32>
    %31 = vector.shape_cast %30 : vector<1x1x32xf32> to vector<1x32xf32>
    %cst = arith.constant dense<0.000000e+00> : vector<8x32xf32>
    %32 = tpu.matmul %4, %13, %cst {dimension_numbers = #tpu.dot_dimension_numbers<[1], [0], [0], [1], [0, 0, 1, 1], [], []>} : vector<8x32xf32>, vector<32x32xf32>, vector<8x32xf32> -> vector<8x32xf32>
    %33 = vector.broadcast %25 : vector<1x32xf32> to vector<8x32xf32>
    %34 = arith.addf %32, %33 : vector<8x32xf32>
    %cst_27 = arith.constant dense<0.000000e+00> : vector<8x32xf32>
    %35 = tpu.matmul %6, %16, %cst_27 {dimension_numbers = #tpu.dot_dimension_numbers<[1], [0], [0], [1], [0, 0, 1, 1], [], []>} : vector<8x32xf32>, vector<32x32xf32>, vector<8x32xf32> -> vector<8x32xf32>
    %36 = vector.broadcast %28 : vector<1x32xf32> to vector<8x32xf32>
    %37 = arith.addf %35, %36 : vector<8x32xf32>
    %cst_28 = arith.constant dense<0.000000e+00> : vector<8x32xf32>
    %38 = tpu.matmul %8, %19, %cst_28 {dimension_numbers = #tpu.dot_dimension_numbers<[1], [0], [0], [1], [0, 0, 1, 1], [], []>} : vector<8x32xf32>, vector<32x32xf32>, vector<8x32xf32> -> vector<8x32xf32>
    %39 = vector.broadcast %31 : vector<1x32xf32> to vector<8x32xf32>
    %40 = arith.addf %38, %39 : vector<8x32xf32>
    %cst_29 = arith.constant 0.353553385 : f32
    %41 = vector.broadcast %cst_29 : f32 to vector<8x32xf32>
    %42 = arith.mulf %34, %41 : vector<8x32xf32>
    %43 = vector.extract_strided_slice %42 {offsets = [0, 0], sizes = [8, 8], strides = [1, 1]} : vector<8x32xf32> to vector<8x8xf32>
    %44 = vector.extract_strided_slice %37 {offsets = [0, 0], sizes = [8, 8], strides = [1, 1]} : vector<8x32xf32> to vector<8x8xf32>
    %45 = vector.extract_strided_slice %40 {offsets = [0, 0], sizes = [8, 8], strides = [1, 1]} : vector<8x32xf32> to vector<8x8xf32>
    %cst_30 = arith.constant dense<0.000000e+00> : vector<8x8xf32>
    %46 = tpu.matmul %43, %44, %cst_30 {dimension_numbers = #tpu.dot_dimension_numbers<[1], [1], [0], [0], [0, 0, 1, 0], [], []>} : vector<8x8xf32>, vector<8x8xf32>, vector<8x8xf32> -> vector<8x8xf32>
    %cst_31 = arith.constant 0.000000e+00 : f32
    %47 = vector.broadcast %cst_31 : f32 to vector<8x8xf32>
    %48 = arith.cmpf oeq, %10, %47 : vector<8x8xf32>
    %cst_32 = arith.constant 9.99999971E-10 : f32
    %49 = vector.broadcast %cst_32 : f32 to vector<8x8xf32>
    %50 = arith.select %48, %49, %46 : vector<8x8xi1>, vector<8x8xf32>
    %cst_33 = arith.constant dense<0xFF800000> : vector<8xf32>
    %51 = vector.multi_reduction <maximumf>, %50, %cst_33 [1] : vector<8x8xf32> to vector<8xf32>
    %52 = vector.shape_cast %51 : vector<8xf32> to vector<8x1xf32>
    %53 = vector.broadcast %52 : vector<8x1xf32> to vector<8x8xf32>
    %54 = arith.subf %50, %53 : vector<8x8xf32>
    %55 = math.exp %54 : vector<8x8xf32>
    %cst_34 = arith.constant dense<0.000000e+00> : vector<8xf32>
    %56 = vector.multi_reduction <add>, %55, %cst_34 [1] : vector<8x8xf32> to vector<8xf32>
    %57 = vector.shape_cast %56 : vector<8xf32> to vector<8x1xf32>
    %58 = vector.broadcast %57 : vector<8x1xf32> to vector<8x8xf32>
    %59 = arith.divf %55, %58 : vector<8x8xf32>
    %cst_35 = arith.constant dense<0.000000e+00> : vector<8x8xf32>
    %60 = tpu.matmul %59, %45, %cst_35 {dimension_numbers = #tpu.dot_dimension_numbers<[1], [0], [0], [1], [0, 0, 1, 1], [], []>} : vector<8x8xf32>, vector<8x8xf32>, vector<8x8xf32> -> vector<8x8xf32>
    %61 = vector.extract_strided_slice %42 {offsets = [0, 8], sizes = [8, 8], strides = [1, 1]} : vector<8x32xf32> to vector<8x8xf32>
    %62 = vector.extract_strided_slice %37 {offsets = [0, 8], sizes = [8, 8], strides = [1, 1]} : vector<8x32xf32> to vector<8x8xf32>
    %63 = vector.extract_strided_slice %40 {offsets = [0, 8], sizes = [8, 8], strides = [1, 1]} : vector<8x32xf32> to vector<8x8xf32>
    %cst_36 = arith.constant dense<0.000000e+00> : vector<8x8xf32>
    %64 = tpu.matmul %61, %62, %cst_36 {dimension_numbers = #tpu.dot_dimension_numbers<[1], [1], [0], [0], [0, 0, 1, 0], [], []>} : vector<8x8xf32>, vector<8x8xf32>, vector<8x8xf32> -> vector<8x8xf32>
    %cst_37 = arith.constant 0.000000e+00 : f32
    %65 = vector.broadcast %cst_37 : f32 to vector<8x8xf32>
    %66 = arith.cmpf oeq, %10, %65 : vector<8x8xf32>
    %cst_38 = arith.constant 9.99999971E-10 : f32
    %67 = vector.broadcast %cst_38 : f32 to vector<8x8xf32>
    %68 = arith.select %66, %67, %64 : vector<8x8xi1>, vector<8x8xf32>
    %cst_39 = arith.constant dense<0xFF800000> : vector<8xf32>
    %69 = vector.multi_reduction <maximumf>, %68, %cst_39 [1] : vector<8x8xf32> to vector<8xf32>
    %70 = vector.shape_cast %69 : vector<8xf32> to vector<8x1xf32>
    %71 = vector.broadcast %70 : vector<8x1xf32> to vector<8x8xf32>
    %72 = arith.subf %68, %71 : vector<8x8xf32>
    %73 = math.exp %72 : vector<8x8xf32>
    %cst_40 = arith.constant dense<0.000000e+00> : vector<8xf32>
    %74 = vector.multi_reduction <add>, %73, %cst_40 [1] : vector<8x8xf32> to vector<8xf32>
    %75 = vector.shape_cast %74 : vector<8xf32> to vector<8x1xf32>
    %76 = vector.broadcast %75 : vector<8x1xf32> to vector<8x8xf32>
    %77 = arith.divf %73, %76 : vector<8x8xf32>
    %cst_41 = arith.constant dense<0.000000e+00> : vector<8x8xf32>
    %78 = tpu.matmul %77, %63, %cst_41 {dimension_numbers = #tpu.dot_dimension_numbers<[1], [0], [0], [1], [0, 0, 1, 1], [], []>} : vector<8x8xf32>, vector<8x8xf32>, vector<8x8xf32> -> vector<8x8xf32>
    %79 = vector.extract_strided_slice %42 {offsets = [0, 16], sizes = [8, 8], strides = [1, 1]} : vector<8x32xf32> to vector<8x8xf32>
    %80 = vector.extract_strided_slice %37 {offsets = [0, 16], sizes = [8, 8], strides = [1, 1]} : vector<8x32xf32> to vector<8x8xf32>
    %81 = vector.extract_strided_slice %40 {offsets = [0, 16], sizes = [8, 8], strides = [1, 1]} : vector<8x32xf32> to vector<8x8xf32>
    %cst_42 = arith.constant dense<0.000000e+00> : vector<8x8xf32>
    %82 = tpu.matmul %79, %80, %cst_42 {dimension_numbers = #tpu.dot_dimension_numbers<[1], [1], [0], [0], [0, 0, 1, 0], [], []>} : vector<8x8xf32>, vector<8x8xf32>, vector<8x8xf32> -> vector<8x8xf32>
    %cst_43 = arith.constant 0.000000e+00 : f32
    %83 = vector.broadcast %cst_43 : f32 to vector<8x8xf32>
    %84 = arith.cmpf oeq, %10, %83 : vector<8x8xf32>
    %cst_44 = arith.constant 9.99999971E-10 : f32
    %85 = vector.broadcast %cst_44 : f32 to vector<8x8xf32>
    %86 = arith.select %84, %85, %82 : vector<8x8xi1>, vector<8x8xf32>
    %cst_45 = arith.constant dense<0xFF800000> : vector<8xf32>
    %87 = vector.multi_reduction <maximumf>, %86, %cst_45 [1] : vector<8x8xf32> to vector<8xf32>
    %88 = vector.shape_cast %87 : vector<8xf32> to vector<8x1xf32>
    %89 = vector.broadcast %88 : vector<8x1xf32> to vector<8x8xf32>
    %90 = arith.subf %86, %89 : vector<8x8xf32>
    %91 = math.exp %90 : vector<8x8xf32>
    %cst_46 = arith.constant dense<0.000000e+00> : vector<8xf32>
    %92 = vector.multi_reduction <add>, %91, %cst_46 [1] : vector<8x8xf32> to vector<8xf32>
    %93 = vector.shape_cast %92 : vector<8xf32> to vector<8x1xf32>
    %94 = vector.broadcast %93 : vector<8x1xf32> to vector<8x8xf32>
    %95 = arith.divf %91, %94 : vector<8x8xf32>
    %cst_47 = arith.constant dense<0.000000e+00> : vector<8x8xf32>
    %96 = tpu.matmul %95, %81, %cst_47 {dimension_numbers = #tpu.dot_dimension_numbers<[1], [0], [0], [1], [0, 0, 1, 1], [], []>} : vector<8x8xf32>, vector<8x8xf32>, vector<8x8xf32> -> vector<8x8xf32>
    %97 = vector.extract_strided_slice %42 {offsets = [0, 24], sizes = [8, 8], strides = [1, 1]} : vector<8x32xf32> to vector<8x8xf32>
    %98 = vector.extract_strided_slice %37 {offsets = [0, 24], sizes = [8, 8], strides = [1, 1]} : vector<8x32xf32> to vector<8x8xf32>
    %99 = vector.extract_strided_slice %40 {offsets = [0, 24], sizes = [8, 8], strides = [1, 1]} : vector<8x32xf32> to vector<8x8xf32>
    %cst_48 = arith.constant dense<0.000000e+00> : vector<8x8xf32>
    %100 = tpu.matmul %97, %98, %cst_48 {dimension_numbers = #tpu.dot_dimension_numbers<[1], [1], [0], [0], [0, 0, 1, 0], [], []>} : vector<8x8xf32>, vector<8x8xf32>, vector<8x8xf32> -> vector<8x8xf32>
    %cst_49 = arith.constant 0.000000e+00 : f32
    %101 = vector.broadcast %cst_49 : f32 to vector<8x8xf32>
    %102 = arith.cmpf oeq, %10, %101 : vector<8x8xf32>
    %cst_50 = arith.constant 9.99999971E-10 : f32
    %103 = vector.broadcast %cst_50 : f32 to vector<8x8xf32>
    %104 = arith.select %102, %103, %100 : vector<8x8xi1>, vector<8x8xf32>
    %cst_51 = arith.constant dense<0xFF800000> : vector<8xf32>
    %105 = vector.multi_reduction <maximumf>, %104, %cst_51 [1] : vector<8x8xf32> to vector<8xf32>
    %106 = vector.shape_cast %105 : vector<8xf32> to vector<8x1xf32>
    %107 = vector.broadcast %106 : vector<8x1xf32> to vector<8x8xf32>
    %108 = arith.subf %104, %107 : vector<8x8xf32>
    %109 = math.exp %108 : vector<8x8xf32>
    %cst_52 = arith.constant dense<0.000000e+00> : vector<8xf32>
    %110 = vector.multi_reduction <add>, %109, %cst_52 [1] : vector<8x8xf32> to vector<8xf32>
    %111 = vector.shape_cast %110 : vector<8xf32> to vector<8x1xf32>
    %112 = vector.broadcast %111 : vector<8x1xf32> to vector<8x8xf32>
    %113 = arith.divf %109, %112 : vector<8x8xf32>
    %cst_53 = arith.constant dense<0.000000e+00> : vector<8x8xf32>
    %114 = tpu.matmul %113, %99, %cst_53 {dimension_numbers = #tpu.dot_dimension_numbers<[1], [0], [0], [1], [0, 0, 1, 1], [], []>} : vector<8x8xf32>, vector<8x8xf32>, vector<8x8xf32> -> vector<8x8xf32>
    %115 = tpu.concatenate %60, %78, %96, %114 in 1 : vector<8x8xf32>, vector<8x8xf32>, vector<8x8xf32>, vector<8x8xf32> -> vector<8x32xf32>
    %c0_54 = arith.constant 0 : index
    %c0_55 = arith.constant 0 : index
    %116 = vector.load %arg16[%c0_54, %c0_55] : memref<8x32xf32, #tpu.memory_space<vmem>>, vector<8x32xf32>
    %cst_56 = arith.constant dense<0.000000e+00> : vector<8x32xf32>
    %117 = tpu.matmul %115, %22, %cst_56 {dimension_numbers = #tpu.dot_dimension_numbers<[1], [0], [0], [1], [0, 0, 1, 1], [], []>} : vector<8x32xf32>, vector<32x32xf32>, vector<8x32xf32> -> vector<8x32xf32>
    %118 = arith.addf %116, %117 : vector<8x32xf32>
    %c0_57 = arith.constant 0 : index
    %c0_58 = arith.constant 0 : index
    %119 = vector.load %arg16[%c0_57, %c0_58] : memref<8x32xf32, #tpu.memory_space<vmem>>, vector<8x32xf32>
    tpu.vector_store %arg16[%c0_57, %c0_58], %118 {strides = array<i32>} : memref<8x32xf32, #tpu.memory_space<vmem>>, vector<8x32xf32>,
    %c0_i32_59 = arith.constant 0 : i32
    %120 = arith.cmpi eq, %arg2, %c0_i32_59 : i32
    %121 = arith.extui %120 : i1 to i32
    %c0_i32_60 = arith.constant 0 : i32
    %122 = arith.cmpi ne, %121, %c0_i32_60 : i32
    scf.if %122 {
      %c0_61 = arith.constant 0 : index
      %c0_62 = arith.constant 0 : index
      %123 = vector.load %arg16[%c0_61, %c0_62] : memref<8x32xf32, #tpu.memory_space<vmem>>, vector<8x32xf32>
      %c0_63 = arith.constant 0 : index
      %c0_64 = arith.constant 0 : index
      %124 = vector.load %arg14[%c0_63, %c0_64] : memref<1x32xf32, #tpu.memory_space<vmem>>, vector<1x32xf32>
      %125 = vector.broadcast %124 : vector<1x32xf32> to vector<8x32xf32>
      %126 = arith.addf %123, %125 : vector<8x32xf32>
      %c0_65 = arith.constant 0 : index
      %c0_66 = arith.constant 0 : index
      %c0_67 = arith.constant 0 : index
      %127 = vector.load %arg15[%c0_65, %c0_66, %c0_67] : memref<1x8x32xf32, #tpu.memory_space<vmem>>, vector<1x8x32xf32>
      %128 = vector.shape_cast %127 : vector<1x8x32xf32> to vector<8x32xf32>
      %129 = vector.shape_cast %126 : vector<8x32xf32> to vector<1x8x32xf32>
      tpu.vector_store %arg15[%c0_65, %c0_66, %c0_67], %129 {strides = array<i32>} : memref<1x8x32xf32, #tpu.memory_space<vmem>>, vector<1x8x32xf32>,
    } else {
    }
    return
  }
  func.func @transform_0(%arg0: i32, %arg1: i32, %arg2: i32) -> (i32, i32, i32) {
    %c0_i32 = arith.constant 0 : i32
    %c0_i32_0 = arith.constant 0 : i32
    return %arg0, %arg1, %c0_i32 : i32, i32, i32
  }
  func.func @transform_1(%arg0: i32, %arg1: i32, %arg2: i32) -> (i32, i32, i32) {
    %c0_i32 = arith.constant 0 : i32
    %c0_i32_0 = arith.constant 0 : i32
    %c0_i32_1 = arith.constant 0 : i32
    return %arg0, %c0_i32, %c0_i32_0 : i32, i32, i32
  }
  func.func @transform_2(%arg0: i32, %arg1: i32, %arg2: i32) -> (i32, i32, i32) {
    %c0_i32 = arith.constant 0 : i32
    %c0_i32_0 = arith.constant 0 : i32
    %c0_i32_1 = arith.constant 0 : i32
    return %arg0, %c0_i32, %c0_i32_0 : i32, i32, i32
  }
  func.func @transform_3(%arg0: i32, %arg1: i32, %arg2: i32) -> (i32, i32, i32, i32) {
    %c0_i32 = arith.constant 0 : i32
    %c0_i32_0 = arith.constant 0 : i32
    %c0_i32_1 = arith.constant 0 : i32
    return %arg0, %c0_i32, %arg1, %c0_i32_0 : i32, i32, i32, i32
  }
  func.func @transform_4(%arg0: i32, %arg1: i32, %arg2: i32) -> (i32, i32, i32) {
    %c0_i32 = arith.constant 0 : i32
    %c0_i32_0 = arith.constant 0 : i32
    %c0_i32_1 = arith.constant 0 : i32
    %c0_i32_2 = arith.constant 0 : i32
    return %c0_i32, %c0_i32_0, %c0_i32_1 : i32, i32, i32
  }
  func.func @transform_5(%arg0: i32, %arg1: i32, %arg2: i32) -> (i32, i32, i32) {
    %c0_i32 = arith.constant 0 : i32
    %c0_i32_0 = arith.constant 0 : i32
    %c0_i32_1 = arith.constant 0 : i32
    %c0_i32_2 = arith.constant 0 : i32
    return %c0_i32, %c0_i32_0, %c0_i32_1 : i32, i32, i32
  }
  func.func @transform_6(%arg0: i32, %arg1: i32, %arg2: i32) -> (i32, i32, i32) {
    %c0_i32 = arith.constant 0 : i32
    %c0_i32_0 = arith.constant 0 : i32
    %c0_i32_1 = arith.constant 0 : i32
    %c0_i32_2 = arith.constant 0 : i32
    return %c0_i32, %c0_i32_0, %c0_i32_1 : i32, i32, i32
  }
  func.func @transform_7(%arg0: i32, %arg1: i32, %arg2: i32) -> (i32, i32, i32) {
    %c0_i32 = arith.constant 0 : i32
    %c0_i32_0 = arith.constant 0 : i32
    %c0_i32_1 = arith.constant 0 : i32
    %c0_i32_2 = arith.constant 0 : i32
    return %c0_i32, %c0_i32_0, %c0_i32_1 : i32, i32, i32
  }
  func.func @transform_8(%arg0: i32, %arg1: i32, %arg2: i32) -> (i32, i32, i32) {
    %c0_i32 = arith.constant 0 : i32
    %c0_i32_0 = arith.constant 0 : i32
    %c0_i32_1 = arith.constant 0 : i32
    %c0_i32_2 = arith.constant 0 : i32
    return %c0_i32, %c0_i32_0, %c0_i32_1 : i32, i32, i32
  }
  func.func @transform_9(%arg0: i32, %arg1: i32, %arg2: i32) -> (i32, i32, i32) {
    %c0_i32 = arith.constant 0 : i32
    %c0_i32_0 = arith.constant 0 : i32
    %c0_i32_1 = arith.constant 0 : i32
    %c0_i32_2 = arith.constant 0 : i32
    return %c0_i32, %c0_i32_0, %c0_i32_1 : i32, i32, i32
  }
  func.func @transform_10(%arg0: i32, %arg1: i32, %arg2: i32) -> (i32, i32, i32) {
    %c0_i32 = arith.constant 0 : i32
    %c0_i32_0 = arith.constant 0 : i32
    %c0_i32_1 = arith.constant 0 : i32
    %c0_i32_2 = arith.constant 0 : i32
    return %c0_i32, %c0_i32_0, %c0_i32_1 : i32, i32, i32
  }
  func.func @transform_11(%arg0: i32, %arg1: i32, %arg2: i32) -> (i32, i32) {
    %c0_i32 = arith.constant 0 : i32
    %c0_i32_0 = arith.constant 0 : i32
    %c0_i32_1 = arith.constant 0 : i32
    return %c0_i32, %c0_i32_0 : i32, i32
  }
  func.func @transform_12(%arg0: i32, %arg1: i32, %arg2: i32) -> (i32, i32, i32) {
    %c0_i32 = arith.constant 0 : i32
    %c0_i32_0 = arith.constant 0 : i32
    return %arg0, %arg1, %c0_i32 : i32, i32, i32
  }
}

</mosaic_0001>

<llo_original>
// kernel: tpu_custom_call.1
$region0: #{tpu_custom_call.1}
  #allocation0 [shape = 'u32[]', space=smem, size = 0x4, offset = 0x4, fixed_abs, tag = 'smem constant byte address 0x4 - core index']
  #allocation1 [shape = 'u32[144,128]{1,0:T(1,128)}', space=vmem, size = 0x12000, scoped, tag = 'internal scratch']
  #allocation2 [shape = 'f32[8,32]{1,0:T(8,128)}', space=vmem, size = 0x1000, scoped, tag = 'scratch operand']
  %s0 = inlined_call_operand.hbm [shape: f32[2,8,32], index: 0, kind: input, shape index: {}]
  %s1 = inlined_call_operand.hbm [shape: f32[2,8,32], index: 1, kind: input, shape index: {}]
  %s2 = inlined_call_operand.hbm [shape: f32[2,8,32], index: 2, kind: input, shape index: {}]
  %s3 = inlined_call_operand.hbm [shape: f32[2,1,8,8], index: 3, kind: input, shape index: {}]
  %s4 = inlined_call_operand.hbm [shape: f32[1,32,32], index: 4, kind: input, shape index: {}]
  %s5 = inlined_call_operand.vmem [shape: f32[1,1,32], index: 5, kind: input, shape index: {}]
  %s6 = inlined_call_operand.hbm [shape: f32[1,32,32], index: 6, kind: input, shape index: {}]
  %s7 = inlined_call_operand.vmem [shape: f32[1,1,32], index: 7, kind: input, shape index: {}]
  %s8 = inlined_call_operand.hbm [shape: f32[1,32,32], index: 8, kind: input, shape index: {}]
  %s9 = inlined_call_operand.vmem [shape: f32[1,1,32], index: 9, kind: input, shape index: {}]
  %s10 = inlined_call_operand.vmem [shape: f32[1,32,32], index: 10, kind: input, shape index: {}]
  %s11 = inlined_call_operand.vmem [shape: f32[1,32], index: 11, kind: input, shape index: {}]
  %s12 = inlined_call_operand.hbm [shape: f32[2,8,32], index: 12, kind: output, shape index: {}]
  %s13 = sld [smem:[#allocation0]]
  $region117: #{tpu_custom_call.1} parent=0
    _
  %s15 = ssub.s32 1, %s13
  %s16 = scalar_select 0, %s15, %s13
  $region1: #{tpu_custom_call.1} parent=0
    #allocation3 [shape = 'u8[8192]{0}', space=vmem, size = 0x2000, scoped, tag = 'input window, operand 0']
    #allocation4 [shape = 's32[2]{0}', space=sflag, size = 0x8, scoped, tag = 'scoped memory for tpu_custom_call.1']
    #allocation5 [shape = 's32[2]{0}', space=sflag, size = 0x8, scoped, tag = 'scoped memory for tpu_custom_call.1']
    #allocation6 [shape = 'u8[8192]{0}', space=vmem, size = 0x2000, scoped, tag = 'input window, operand 1']
    #allocation7 [shape = 's32[2]{0}', space=sflag, size = 0x8, scoped, tag = 'scoped memory for tpu_custom_call.1']
    #allocation8 [shape = 'u8[8192]{0}', space=vmem, size = 0x2000, scoped, tag = 'input window, operand 2']
    #allocation9 [shape = 'u8[8192]{0}', space=vmem, size = 0x2000, scoped, tag = 'input window, operand 3']
    #allocation10 [shape = 's32[2]{0}', space=sflag, size = 0x8, scoped, tag = 'scoped memory for tpu_custom_call.1']
    #allocation11 [shape = 'u8[16384]{0}', space=vmem, size = 0x4000, scoped, tag = 'input window, operand 4, single buffered']
    #allocation12 [shape = 'u8[16384]{0}', space=vmem, size = 0x4000, scoped, tag = 'input window, operand 6, single buffered']
    #allocation13 [shape = 's32[1]{0}', space=sflag, size = 0x4, scoped, tag = 'scoped memory for tpu_custom_call.1']
    #allocation14 [shape = 'u8[16384]{0}', space=vmem, size = 0x4000, scoped, tag = 'input window, operand 8, single buffered']
    #allocation15 [shape = 'u8[8192]{0}', space=vmem, size = 0x2000, scoped, tag = 'output window, operand 0']
    %17 = vsyncpa [#allocation4], 0
    %s18 = scalar_lea.sflag [#allocation4], 1
    %19 = vsyncpa %s18, 0
    %20 = vsyncpa [#allocation7], 0
    %s21 = scalar_lea.sflag [#allocation7], 1
    %22 = vsyncpa %s21, 0
    %23 = vsyncpa [#allocation10], 0
    %s24 = scalar_lea.sflag [#allocation10], 1
    %25 = vsyncpa %s24, 0
    %26 = vsyncpa [#allocation13], 0
    %27 = vsyncpa [#allocation5], 0
    %s28 = scalar_lea.sflag [#allocation5], 1
    %29 = vsyncpa %s28, 0
    loop: start=0, step=1, limit=4
    $region2: #{tpu_custom_call.1} parent=1 // loop_pre_header
      _
    $region3: #{tpu_custom_call.1} parent=1 // loop_header
      %s31 = sphi 0, %s35
      %p32 = scmp.ge.s32.totalorder %s31, 4
      %s38 = sphi 0, %s57
      %s39 = sphi 0, %s53
      %s40 = sphi 0, %s49
      %s41 = sphi 0, %s38
      %s42 = sphi 0, %s39
      %s43 = sphi 0, %s40
      %s44 = sphi 0, %s41
      %s45 = sphi 0, %s42
      %s46 = sphi 0, %s43
      %s62 = sphi 0, %s64
      %s65 = sphi 0, %s62
      %s66 = sphi 0, %s65
      %s82 = sphi 0, %s66
      %s88 = sphi 0, %s90
      %s91 = sphi 0, %s88
      %s92 = sphi 0, %s91
      %s108 = sphi 0, %s92
      %s114 = sphi 0, %s116
      %s117 = sphi 0, %s114
      %s118 = sphi 0, %s117
      %s134 = sphi 0, %s118
      %s142 = sphi 0, %s144
      %s145 = sphi 0, %s142
      %s146 = sphi 0, %s145
      %s162 = sphi 0, %s146
      %s166 = sphi 0, %s166
      %s168 = sphi 0, %s166
      %s169 = sphi 0, %s168
      %s183 = sphi 0, %s169
      %s187 = sphi 0, %s187
      %s189 = sphi 0, %s187
      %s190 = sphi 0, %s189
      %s204 = sphi 0, %s190
      %s208 = sphi 0, %s208
      %s210 = sphi 0, %s208
      %s211 = sphi 0, %s210
      %s225 = sphi 0, %s211
      %s229 = sphi 0, %s229
      %s231 = sphi 0, %s229
      %s232 = sphi 0, %s231
      %s246 = sphi 0, %s232
      %s250 = sphi 0, %s250
      %s252 = sphi 0, %s250
      %s253 = sphi 0, %s252
      %s267 = sphi 0, %s253
      %s271 = sphi 0, %s271
      %s273 = sphi 0, %s271
      %s274 = sphi 0, %s273
      %s288 = sphi 0, %s274
      %s292 = sphi 0, %s292
      %s294 = sphi 0, %s292
      %s295 = sphi 0, %s294
      %s309 = sphi 0, %s295
      %s313 = sphi 0, %s313
      %s315 = sphi 0, %s313
      %s316 = sphi 0, %s315
      %s330 = sphi 0, %s316
      %s338 = sphi 0, %s340
      %s341 = sphi 0, %s338
      %s342 = sphi 0, %s341
      %s358 = sphi 0, %s342
    $region4: #{tpu_custom_call.1} parent=1 // loop_header_branch
      %34 = sbr.rel (%p32) target = $region8
    $region5: #{tpu_custom_call.1} parent=1 // loop_body
      %s36 = ssub.s32 %s31, 1
      %s37 = ssub.s32 %s31, 2
      %s47 = sadd.s32 1, %s40
      %p48 = scmp.ge.s32.totalorder %s47, 1
      %s49 = scalar_select %p48, 0, %s47
      %s50 = sadd.s32 1, %s39
      %s51 = scalar_select %p48, %s50, %s39
      %p52 = scmp.ge.s32.totalorder %s51, 1
      %s53 = scalar_select %p52, 0, %s51
      %s54 = sadd.s32 1, %s38
      %s55 = scalar_select %p52, %s54, %s38
      %p56 = scmp.ge.s32.totalorder %s55, 2
      %s57 = scalar_select %p56, 0, %s55
      %s58 = ssub.s32 %s38, %s57
      %s59 = ssub.s32 %s39, %s53
      %s60 = sor.u32 %s58, %s59
      %p61 = scmp.eq.s32.totalorder %s60, 0
      %s63 = sadd.s32 %s62, 1
      %s64 = scalar_select %p61, %s62, %s63
      %p67 = pneg %p61
      %p68 = scmp.eq.s32.totalorder %s31, 1
      %p69 = por %p67, %p68
      %p70 = scmp.ne.s32.totalorder %s62, %s65
      %p71 = scmp.eq.s32.totalorder %s31, 0
      %p72 = por %p70, %p71
      %p73 = scmp.ne.s32.totalorder %s62, %s65
      %p74 = scmp.eq.s32.totalorder %s36, 1
      %p75 = por %p73, %p74
      %p76 = scmp.ne.s32.totalorder %s65, %s66
      %p77 = scmp.eq.s32.totalorder %s36, 0
      %p78 = por %p76, %p77
      %p79 = scmp.ne.s32.totalorder %s65, %s66
      %p80 = scmp.eq.s32.totalorder %s37, 1
      %p81 = por %p79, %p80
      %p83 = scmp.ne.s32.totalorder %s66, %s82
      %p84 = scmp.eq.s32.totalorder %s37, 0
      %p85 = por %p83, %p84
      %s86 = ssub.s32 %s38, %s57
      %p87 = scmp.eq.s32.totalorder %s86, 0
      %s89 = sadd.s32 %s88, 1
      %s90 = scalar_select %p87, %s88, %s89
      %p93 = pneg %p87
      %p94 = scmp.eq.s32.totalorder %s31, 1
      %p95 = por %p93, %p94
      %p96 = scmp.ne.s32.totalorder %s88, %s91
      %p97 = scmp.eq.s32.totalorder %s31, 0
      %p98 = por %p96, %p97
      %p99 = scmp.ne.s32.totalorder %s88, %s91
      %p100 = scmp.eq.s32.totalorder %s36, 1
      %p101 = por %p99, %p100
      %p102 = scmp.ne.s32.totalorder %s91, %s92
      %p103 = scmp.eq.s32.totalorder %s36, 0
      %p104 = por %p102, %p103
      %p105 = scmp.ne.s32.totalorder %s91, %s92
      %p106 = scmp.eq.s32.totalorder %s37, 1
      %p107 = por %p105, %p106
      %p109 = scmp.ne.s32.totalorder %s92, %s108
      %p110 = scmp.eq.s32.totalorder %s37, 0
      %p111 = por %p109, %p110
      %s112 = ssub.s32 %s38, %s57
      %p113 = scmp.eq.s32.totalorder %s112, 0
      %s115 = sadd.s32 %s114, 1
      %s116 = scalar_select %p113, %s114, %s115
      %p119 = pneg %p113
      %p120 = scmp.eq.s32.totalorder %s31, 1
      %p121 = por %p119, %p120
      %p122 = scmp.ne.s32.totalorder %s114, %s117
      %p123 = scmp.eq.s32.totalorder %s31, 0
      %p124 = por %p122, %p123
      %p125 = scmp.ne.s32.totalorder %s114, %s117
      %p126 = scmp.eq.s32.totalorder %s36, 1
      %p127 = por %p125, %p126
      %p128 = scmp.ne.s32.totalorder %s117, %s118
      %p129 = scmp.eq.s32.totalorder %s36, 0
      %p130 = por %p128, %p129
      %p131 = scmp.ne.s32.totalorder %s117, %s118
      %p132 = scmp.eq.s32.totalorder %s37, 1
      %p133 = por %p131, %p132
      %p135 = scmp.ne.s32.totalorder %s118, %s134
      %p136 = scmp.eq.s32.totalorder %s37, 0
      %p137 = por %p135, %p136
      %s138 = ssub.s32 %s38, %s57
      %s139 = ssub.s32 %s39, %s53
      %s140 = sor.u32 %s138, %s139
      %p141 = scmp.eq.s32.totalorder %s140, 0
      %s143 = sadd.s32 %s142, 1
      %s144 = scalar_select %p141, %s142, %s143
      %p147 = pneg %p141
      %p148 = scmp.eq.s32.totalorder %s31, 1
      %p149 = por %p147, %p148
      %p150 = scmp.ne.s32.totalorder %s142, %s145
      %p151 = scmp.eq.s32.totalorder %s31, 0
      %p152 = por %p150, %p151
      %p153 = scmp.ne.s32.totalorder %s142, %s145
      %p154 = scmp.eq.s32.totalorder %s36, 1
      %p155 = por %p153, %p154
      %p156 = scmp.ne.s32.totalorder %s145, %s146
      %p157 = scmp.eq.s32.totalorder %s36, 0
      %p158 = por %p156, %p157
      %p159 = scmp.ne.s32.totalorder %s145, %s146
      %p160 = scmp.eq.s32.totalorder %s37, 1
      %p161 = por %p159, %p160
      %p163 = scmp.ne.s32.totalorder %s146, %s162
      %p164 = scmp.eq.s32.totalorder %s37, 0
      %p165 = por %p163, %p164
      %s167 = sadd.s32 %s166, 1
      %p170 = scmp.eq.s32.totalorder %s31, 1
      %p171 = scmp.ne.s32.totalorder %s166, %s168
      %p172 = scmp.eq.s32.totalorder %s31, 0
      %p173 = por %p171, %p172
      %p174 = scmp.ne.s32.totalorder %s166, %s168
      %p175 = scmp.eq.s32.totalorder %s36, 1
      %p176 = por %p174, %p175
      %p177 = scmp.ne.s32.totalorder %s168, %s169
      %p178 = scmp.eq.s32.totalorder %s36, 0
      %p179 = por %p177, %p178
      %p180 = scmp.ne.s32.totalorder %s168, %s169
      %p181 = scmp.eq.s32.totalorder %s37, 1
      %p182 = por %p180, %p181
      %p184 = scmp.ne.s32.totalorder %s169, %s183
      %p185 = scmp.eq.s32.totalorder %s37, 0
      %p186 = por %p184, %p185
      %s188 = sadd.s32 %s187, 1
      %p191 = scmp.eq.s32.totalorder %s31, 1
      %p192 = scmp.ne.s32.totalorder %s187, %s189
      %p193 = scmp.eq.s32.totalorder %s31, 0
      %p194 = por %p192, %p193
      %p195 = scmp.ne.s32.totalorder %s187, %s189
      %p196 = scmp.eq.s32.totalorder %s36, 1
      %p197 = por %p195, %p196
      %p198 = scmp.ne.s32.totalorder %s189, %s190
      %p199 = scmp.eq.s32.totalorder %s36, 0
      %p200 = por %p198, %p199
      %p201 = scmp.ne.s32.totalorder %s189, %s190
      %p202 = scmp.eq.s32.totalorder %s37, 1
      %p203 = por %p201, %p202
      %p205 = scmp.ne.s32.totalorder %s190, %s204
      %p206 = scmp.eq.s32.totalorder %s37, 0
      %p207 = por %p205, %p206
      %s209 = sadd.s32 %s208, 1
      %p212 = scmp.eq.s32.totalorder %s31, 1
      %p213 = scmp.ne.s32.totalorder %s208, %s210
      %p214 = scmp.eq.s32.totalorder %s31, 0
      %p215 = por %p213, %p214
      %p216 = scmp.ne.s32.totalorder %s208, %s210
      %p217 = scmp.eq.s32.totalorder %s36, 1
      %p218 = por %p216, %p217
      %p219 = scmp.ne.s32.totalorder %s210, %s211
      %p220 = scmp.eq.s32.totalorder %s36, 0
      %p221 = por %p219, %p220
      %p222 = scmp.ne.s32.totalorder %s210, %s211
      %p223 = scmp.eq.s32.totalorder %s37, 1
      %p224 = por %p222, %p223
      %p226 = scmp.ne.s32.totalorder %s211, %s225
      %p227 = scmp.eq.s32.totalorder %s37, 0
      %p228 = por %p226, %p227
      %s230 = sadd.s32 %s229, 1
      %p233 = scmp.eq.s32.totalorder %s31, 1
      %p234 = scmp.ne.s32.totalorder %s229, %s231
      %p235 = scmp.eq.s32.totalorder %s31, 0
      %p236 = por %p234, %p235
      %p237 = scmp.ne.s32.totalorder %s229, %s231
      %p238 = scmp.eq.s32.totalorder %s36, 1
      %p239 = por %p237, %p238
      %p240 = scmp.ne.s32.totalorder %s231, %s232
      %p241 = scmp.eq.s32.totalorder %s36, 0
      %p242 = por %p240, %p241
      %p243 = scmp.ne.s32.totalorder %s231, %s232
      %p244 = scmp.eq.s32.totalorder %s37, 1
      %p245 = por %p243, %p244
      %p247 = scmp.ne.s32.totalorder %s232, %s246
      %p248 = scmp.eq.s32.totalorder %s37, 0
      %p249 = por %p247, %p248
      %s251 = sadd.s32 %s250, 1
      %p254 = scmp.eq.s32.totalorder %s31, 1
      %p255 = scmp.ne.s32.totalorder %s250, %s252
      %p256 = scmp.eq.s32.totalorder %s31, 0
      %p257 = por %p255, %p256
      %p258 = scmp.ne.s32.totalorder %s250, %s252
      %p259 = scmp.eq.s32.totalorder %s36, 1
      %p260 = por %p258, %p259
      %p261 = scmp.ne.s32.totalorder %s252, %s253
      %p262 = scmp.eq.s32.totalorder %s36, 0
      %p263 = por %p261, %p262
      %p264 = scmp.ne.s32.totalorder %s252, %s253
      %p265 = scmp.eq.s32.totalorder %s37, 1
      %p266 = por %p264, %p265
      %p268 = scmp.ne.s32.totalorder %s253, %s267
      %p269 = scmp.eq.s32.totalorder %s37, 0
      %p270 = por %p268, %p269
      %s272 = sadd.s32 %s271, 1
      %p275 = scmp.eq.s32.totalorder %s31, 1
      %p276 = scmp.ne.s32.totalorder %s271, %s273
      %p277 = scmp.eq.s32.totalorder %s31, 0
      %p278 = por %p276, %p277
      %p279 = scmp.ne.s32.totalorder %s271, %s273
      %p280 = scmp.eq.s32.totalorder %s36, 1
      %p281 = por %p279, %p280
      %p282 = scmp.ne.s32.totalorder %s273, %s274
      %p283 = scmp.eq.s32.totalorder %s36, 0
      %p284 = por %p282, %p283
      %p285 = scmp.ne.s32.totalorder %s273, %s274
      %p286 = scmp.eq.s32.totalorder %s37, 1
      %p287 = por %p285, %p286
      %p289 = scmp.ne.s32.totalorder %s274, %s288
      %p290 = scmp.eq.s32.totalorder %s37, 0
      %p291 = por %p289, %p290
      %s293 = sadd.s32 %s292, 1
      %p296 = scmp.eq.s32.totalorder %s31, 1
      %p297 = scmp.ne.s32.totalorder %s292, %s294
      %p298 = scmp.eq.s32.totalorder %s31, 0
      %p299 = por %p297, %p298
      %p300 = scmp.ne.s32.totalorder %s292, %s294
      %p301 = scmp.eq.s32.totalorder %s36, 1
      %p302 = por %p300, %p301
      %p303 = scmp.ne.s32.totalorder %s294, %s295
      %p304 = scmp.eq.s32.totalorder %s36, 0
      %p305 = por %p303, %p304
      %p306 = scmp.ne.s32.totalorder %s294, %s295
      %p307 = scmp.eq.s32.totalorder %s37, 1
      %p308 = por %p306, %p307
      %p310 = scmp.ne.s32.totalorder %s295, %s309
      %p311 = scmp.eq.s32.totalorder %s37, 0
      %p312 = por %p310, %p311
      %s314 = sadd.s32 %s313, 1
      %p317 = scmp.eq.s32.totalorder %s31, 1
      %p318 = scmp.ne.s32.totalorder %s313, %s315
      %p319 = scmp.eq.s32.totalorder %s31, 0
      %p320 = por %p318, %p319
      %p321 = scmp.ne.s32.totalorder %s313, %s315
      %p322 = scmp.eq.s32.totalorder %s36, 1
      %p323 = por %p321, %p322
      %p324 = scmp.ne.s32.totalorder %s315, %s316
      %p325 = scmp.eq.s32.totalorder %s36, 0
      %p326 = por %p324, %p325
      %p327 = scmp.ne.s32.totalorder %s315, %s316
      %p328 = scmp.eq.s32.totalorder %s37, 1
      %p329 = por %p327, %p328
      %p331 = scmp.ne.s32.totalorder %s316, %s330
      %p332 = scmp.eq.s32.totalorder %s37, 0
      %p333 = por %p331, %p332
      %s334 = ssub.s32 %s38, %s57
      %s335 = ssub.s32 %s39, %s53
      %s336 = sor.u32 %s334, %s335
      %p337 = scmp.eq.s32.totalorder %s336, 0
      %s339 = sadd.s32 %s338, 1
      %s340 = scalar_select %p337, %s338, %s339
      %p343 = pneg %p337
      %p344 = scmp.eq.s32.totalorder %s31, 1
      %p345 = por %p343, %p344
      %p346 = scmp.ne.s32.totalorder %s338, %s341
      %p347 = scmp.eq.s32.totalorder %s31, 0
      %p348 = por %p346, %p347
      %p349 = scmp.ne.s32.totalorder %s338, %s341
      %p350 = scmp.eq.s32.totalorder %s36, 1
      %p351 = por %p349, %p350
      %p352 = scmp.ne.s32.totalorder %s341, %s342
      %p353 = scmp.eq.s32.totalorder %s36, 0
      %p354 = por %p352, %p353
      %p355 = scmp.ne.s32.totalorder %s341, %s342
      %p356 = scmp.eq.s32.totalorder %s37, 1
      %p357 = por %p355, %p356
      %p359 = scmp.ne.s32.totalorder %s342, %s358
      %p360 = scmp.eq.s32.totalorder %s37, 0
      %p361 = por %p359, %p360
      %p362 = scmp.le.s32.totalorder 1, %s31
      %p363 = scmp.lt.s32.totalorder %s31, 3
      %p364 = pnand %p362, %p363
      %p365 = pneg %p364
      // Predicated region
      $region9: #{tpu_custom_call.1} parent=5 // pred_check
        _
      $region10: #{tpu_custom_call.1} parent=5 // pred_check_branch
        %367 = sbr.rel (%p364) target = $region12
      $region11: #{tpu_custom_call.1} parent=5 // pred_region
        %s368 = ssub.s32 %s31, 1
        // Predicated region
        $region13: #{tpu_custom_call.1} parent=11 // pred_check
          %p369 = pneg %p179
        $region14: #{tpu_custom_call.1} parent=11 // pred_check_branch
          %371 = sbr.rel (%p369) target = $region16
        $region15: #{tpu_custom_call.1} parent=11 // pred_region
          %s373 = ssub.s32 512, 512
          %374 = vsyncadd [#allocation10], %s373
          %s375 = sshll.u32 [#allocation11], 4
          %s376 = int_to_ptr.vmem [resolvable:$true] %s375
          %381 = dma.hbm_to_vmem [thread:$0]  %s4, 512, %s376, [#allocation10], 128, 128, 8
        $region16: #{tpu_custom_call.1} parent=11 // pred_fallthru
          _
        // Predicated region
        $region17: #{tpu_custom_call.1} parent=11 // pred_check
          %p382 = pneg %p200
        $region18: #{tpu_custom_call.1} parent=11 // pred_check_branch
          %384 = sbr.rel (%p382) target = $region20
        $region19: #{tpu_custom_call.1} parent=11 // pred_region
          _
        $region20: #{tpu_custom_call.1} parent=11 // pred_fallthru
          _
        // Predicated region
        $region21: #{tpu_custom_call.1} parent=11 // pred_check
          %p385 = pneg %p221
        $region22: #{tpu_custom_call.1} parent=11 // pred_check_branch
          %387 = sbr.rel (%p385) target = $region24
        $region23: #{tpu_custom_call.1} parent=11 // pred_region
          %s389 = ssub.s32 512, 512
          %390 = vsyncadd [#allocation13], %s389
          %s391 = sshll.u32 [#allocation12], 4
          %s392 = int_to_ptr.vmem [resolvable:$true] %s391
          %397 = dma.hbm_to_vmem [thread:$0]  %s6, 512, %s392, [#allocation13], 128, 128, 8
        $region24: #{tpu_custom_call.1} parent=11 // pred_fallthru
          _
        // Predicated region
        $region25: #{tpu_custom_call.1} parent=11 // pred_check
          %p398 = pneg %p242
        $region26: #{tpu_custom_call.1} parent=11 // pred_check_branch
          %400 = sbr.rel (%p398) target = $region28
        $region27: #{tpu_custom_call.1} parent=11 // pred_region
          _
        $region28: #{tpu_custom_call.1} parent=11 // pred_fallthru
          _
        // Predicated region
        $region29: #{tpu_custom_call.1} parent=11 // pred_check
          %p401 = pneg %p263
        $region30: #{tpu_custom_call.1} parent=11 // pred_check_branch
          %403 = sbr.rel (%p401) target = $region32
        $region31: #{tpu_custom_call.1} parent=11 // pred_region
          %s405 = ssub.s32 512, 512
          %406 = vsyncadd [#allocation13], %s405
          %s407 = sshll.u32 [#allocation14], 4
          %s408 = int_to_ptr.vmem [resolvable:$true] %s407
          %413 = dma.hbm_to_vmem [thread:$0]  %s8, 512, %s408, [#allocation13], 128, 128, 8
        $region32: #{tpu_custom_call.1} parent=11 // pred_fallthru
          _
        // Predicated region
        $region33: #{tpu_custom_call.1} parent=11 // pred_check
          %p414 = pneg %p284
        $region34: #{tpu_custom_call.1} parent=11 // pred_check_branch
          %416 = sbr.rel (%p414) target = $region36
        $region35: #{tpu_custom_call.1} parent=11 // pred_region
          _
        $region36: #{tpu_custom_call.1} parent=11 // pred_fallthru
          _
        // Predicated region
        $region37: #{tpu_custom_call.1} parent=11 // pred_check
          %p417 = pneg %p305
        $region38: #{tpu_custom_call.1} parent=11 // pred_check_branch
          %419 = sbr.rel (%p417) target = $region40
        $region39: #{tpu_custom_call.1} parent=11 // pred_region
          _
        $region40: #{tpu_custom_call.1} parent=11 // pred_fallthru
          _
        // Predicated region
        $region41: #{tpu_custom_call.1} parent=11 // pred_check
          %p420 = pneg %p326
        $region42: #{tpu_custom_call.1} parent=11 // pred_check_branch
          %422 = sbr.rel (%p420) target = $region44
        $region43: #{tpu_custom_call.1} parent=11 // pred_region
          _
        $region44: #{tpu_custom_call.1} parent=11 // pred_fallthru
          _
      $region12: #{tpu_custom_call.1} parent=5 // pred_fallthru
        _
      %p423 = scmp.lt.s32.totalorder %s31, 2
      // Predicated region
      $region45: #{tpu_custom_call.1} parent=5 // pred_check
        %p424 = pneg %p423
      $region46: #{tpu_custom_call.1} parent=5 // pred_check_branch
        %426 = sbr.rel (%p424) target = $region48
      $region47: #{tpu_custom_call.1} parent=5 // pred_region
        // Predicated region
        $region49: #{tpu_custom_call.1} parent=47 // pred_check
          %p427 = pneg %p72
        $region50: #{tpu_custom_call.1} parent=47 // pred_check_branch
          %429 = sbr.rel (%p427) target = $region52
        $region51: #{tpu_custom_call.1} parent=47 // pred_region
          %s430 = sand.u32 %s62, 1
          %s431 = scalar_lea.sflag [#allocation4], %s430
          %s432 = sand.u32 %s62, 1
          %s433 = smul.addr %s432, 8
          %s434 = scalar_lea.vmem [#allocation3], %s433
          %s436 = ssub.s32 128, 128
          %437 = vsyncadd %s431, %s436
          %s438 = sadd.s32 %s39, %s38
          %s439 = smul.addr %s438, 128
          %s440 = scalar_lea.hbm %s0, %s439
          %s442 = sshll.u32 %s434, 4
          %s443 = int_to_ptr.vmem [resolvable:$true] %s442
          %445 = dma.hbm_to_vmem [thread:$0]  %s440, 128, %s443, %s431
        $region52: #{tpu_custom_call.1} parent=47 // pred_fallthru
          _
        // Predicated region
        $region53: #{tpu_custom_call.1} parent=47 // pred_check
          %p446 = pneg %p98
        $region54: #{tpu_custom_call.1} parent=47 // pred_check_branch
          %448 = sbr.rel (%p446) target = $region56
        $region55: #{tpu_custom_call.1} parent=47 // pred_region
          %s449 = sand.u32 %s31, 1
          %s450 = scalar_lea.sflag [#allocation7], %s449
          %s451 = sand.u32 %s88, 1
          %s452 = smul.addr %s451, 8
          %s453 = scalar_lea.vmem [#allocation6], %s452
          %s455 = ssub.s32 128, 128
          %456 = vsyncadd %s450, %s455
          %s457 = smul.addr %s38, 128
          %s458 = scalar_lea.hbm %s1, %s457
          %s460 = sshll.u32 %s453, 4
          %s461 = int_to_ptr.vmem [resolvable:$true] %s460
          %463 = dma.hbm_to_vmem [thread:$0]  %s458, 128, %s461, %s450
        $region56: #{tpu_custom_call.1} parent=47 // pred_fallthru
          _
        // Predicated region
        $region57: #{tpu_custom_call.1} parent=47 // pred_check
          %p464 = pneg %p124
        $region58: #{tpu_custom_call.1} parent=47 // pred_check_branch
          %466 = sbr.rel (%p464) target = $region60
        $region59: #{tpu_custom_call.1} parent=47 // pred_region
          %s467 = sand.u32 %s31, 1
          %s468 = scalar_lea.sflag [#allocation7], %s467
          %s469 = sand.u32 %s114, 1
          %s470 = smul.addr %s469, 8
          %s471 = scalar_lea.vmem [#allocation8], %s470
          %s473 = ssub.s32 128, 128
          %474 = vsyncadd %s468, %s473
          %s475 = smul.addr %s38, 128
          %s476 = scalar_lea.hbm %s2, %s475
          %s478 = sshll.u32 %s471, 4
          %s479 = int_to_ptr.vmem [resolvable:$true] %s478
          %481 = dma.hbm_to_vmem [thread:$0]  %s476, 128, %s479, %s468
        $region60: #{tpu_custom_call.1} parent=47 // pred_fallthru
          _
        // Predicated region
        $region61: #{tpu_custom_call.1} parent=47 // pred_check
          %p482 = pneg %p152
        $region62: #{tpu_custom_call.1} parent=47 // pred_check_branch
          %484 = sbr.rel (%p482) target = $region64
        $region63: #{tpu_custom_call.1} parent=47 // pred_region
          %s485 = sand.u32 %s31, 1
          %s486 = scalar_lea.sflag [#allocation10], %s485
          %s487 = sand.u32 %s142, 1
          %s488 = smul.addr %s487, 8
          %s489 = scalar_lea.vmem [#allocation9], %s488
          %s491 = ssub.s32 128, 128
          %492 = vsyncadd %s486, %s491
          %s493 = sadd.s32 %s39, %s38
          %s494 = smul.addr %s493, 128
          %s495 = scalar_lea.hbm %s3, %s494
          %s497 = sshll.u32 %s489, 4
          %s498 = int_to_ptr.vmem [resolvable:$true] %s497
          %500 = dma.hbm_to_vmem [thread:$0]  %s495, 128, %s498, %s486
        $region64: #{tpu_custom_call.1} parent=47 // pred_fallthru
          _
      $region48: #{tpu_custom_call.1} parent=5 // pred_fallthru
        _
      %p501 = scmp.le.s32.totalorder 1, %s31
      %p502 = scmp.lt.s32.totalorder %s31, 3
      %p503 = pnand %p501, %p502
      %p504 = pneg %p503
      // Predicated region
      $region65: #{tpu_custom_call.1} parent=5 // pred_check
        _
      $region66: #{tpu_custom_call.1} parent=5 // pred_check_branch
        %506 = sbr.rel (%p503) target = $region68
      $region67: #{tpu_custom_call.1} parent=5 // pred_region
        %s507 = ssub.s32 %s31, 1
        %s508 = sand.u32 %s65, 1
        %s509 = scalar_lea.sflag [#allocation4], %s508
        %s510 = sand.u32 %s65, 1
        %s511 = smul.addr %s510, 8
        %s512 = scalar_lea.vmem [#allocation3], %s511
        // Predicated region
        $region69: #{tpu_custom_call.1} parent=67 // pred_check
          %p513 = pneg %p78
        $region70: #{tpu_custom_call.1} parent=67 // pred_check_branch
          %515 = sbr.rel (%p513) target = $region72
        $region71: #{tpu_custom_call.1} parent=67 // pred_region
          %516 = dma.done %s509, 128
        $region72: #{tpu_custom_call.1} parent=67 // pred_fallthru
          _
        %s517 = sand.u32 %s36, 1
        %s518 = scalar_lea.sflag [#allocation7], %s517
        %s519 = sand.u32 %s91, 1
        %s520 = smul.addr %s519, 8
        %s521 = scalar_lea.vmem [#allocation6], %s520
        // Predicated region
        $region73: #{tpu_custom_call.1} parent=67 // pred_check
          %p522 = pneg %p104
        $region74: #{tpu_custom_call.1} parent=67 // pred_check_branch
          %524 = sbr.rel (%p522) target = $region76
        $region75: #{tpu_custom_call.1} parent=67 // pred_region
          %525 = dma.done %s518, 128
        $region76: #{tpu_custom_call.1} parent=67 // pred_fallthru
          _
        %s526 = sand.u32 %s36, 1
        %s527 = scalar_lea.sflag [#allocation7], %s526
        %s528 = sand.u32 %s117, 1
        %s529 = smul.addr %s528, 8
        %s530 = scalar_lea.vmem [#allocation8], %s529
        // Predicated region
        $region77: #{tpu_custom_call.1} parent=67 // pred_check
          %p531 = pneg %p130
        $region78: #{tpu_custom_call.1} parent=67 // pred_check_branch
          %533 = sbr.rel (%p531) target = $region80
        $region79: #{tpu_custom_call.1} parent=67 // pred_region
          %534 = dma.done %s527, 128
        $region80: #{tpu_custom_call.1} parent=67 // pred_fallthru
          _
        %s535 = sand.u32 %s36, 1
        %s536 = scalar_lea.sflag [#allocation10], %s535
        %s537 = sand.u32 %s145, 1
        %s538 = smul.addr %s537, 8
        %s539 = scalar_lea.vmem [#allocation9], %s538
        // Predicated region
        $region81: #{tpu_custom_call.1} parent=67 // pred_check
          %p540 = pneg %p158
        $region82: #{tpu_custom_call.1} parent=67 // pred_check_branch
          %542 = sbr.rel (%p540) target = $region84
        $region83: #{tpu_custom_call.1} parent=67 // pred_region
          %543 = dma.done %s536, 128
        $region84: #{tpu_custom_call.1} parent=67 // pred_fallthru
          _
        // Predicated region
        $region85: #{tpu_custom_call.1} parent=67 // pred_check
          %p544 = pneg %p179
        $region86: #{tpu_custom_call.1} parent=67 // pred_check_branch
          %546 = sbr.rel (%p544) target = $region88
        $region87: #{tpu_custom_call.1} parent=67 // pred_region
          %547 = dma.done [#allocation10], 512
        $region88: #{tpu_custom_call.1} parent=67 // pred_fallthru
          _
        // Predicated region
        $region89: #{tpu_custom_call.1} parent=67 // pred_check
          %p548 = pneg %p221
        $region90: #{tpu_custom_call.1} parent=67 // pred_check_branch
          %550 = sbr.rel (%p548) target = $region92
        $region91: #{tpu_custom_call.1} parent=67 // pred_region
          %551 = dma.done [#allocation13], 512
        $region92: #{tpu_custom_call.1} parent=67 // pred_fallthru
          _
        // Predicated region
        $region93: #{tpu_custom_call.1} parent=67 // pred_check
          %p552 = pneg %p263
        $region94: #{tpu_custom_call.1} parent=67 // pred_check_branch
          %554 = sbr.rel (%p552) target = $region96
        $region95: #{tpu_custom_call.1} parent=67 // pred_region
          %555 = dma.done [#allocation13], 512
        $region96: #{tpu_custom_call.1} parent=67 // pred_fallthru
          _
        %s556 = sand.u32 %s65, 1
        %s557 = scalar_lea.sflag [#allocation4], %s556
        %s558 = sand.u32 %s65, 1
        %s559 = smul.addr %s558, 8
        %s560 = scalar_lea.vmem [#allocation3], %s559
        %p561 = pneg %p78
        %p562 = pneg %p75
        %s563 = sand.u32 %s36, 1
        %s564 = scalar_lea.sflag [#allocation7], %s563
        %s565 = sand.u32 %s91, 1
        %s566 = smul.addr %s565, 8
        %s567 = scalar_lea.vmem [#allocation6], %s566
        %p568 = pneg %p104
        %p569 = pneg %p101
        %s570 = sand.u32 %s36, 1
        %s571 = scalar_lea.sflag [#allocation7], %s570
        %s572 = sand.u32 %s117, 1
        %s573 = smul.addr %s572, 8
        %s574 = scalar_lea.vmem [#allocation8], %s573
        %p575 = pneg %p130
        %p576 = pneg %p127
        %s577 = sand.u32 %s36, 1
        %s578 = scalar_lea.sflag [#allocation10], %s577
        %s579 = sand.u32 %s145, 1
        %s580 = smul.addr %s579, 8
        %s581 = scalar_lea.vmem [#allocation9], %s580
        %p582 = pneg %p158
        %p583 = pneg %p155
        %p584 = pneg %p179
        %p585 = pneg %p176
        %p586 = pneg %p200
        %p587 = pneg %p197
        %p588 = pneg %p221
        %p589 = pneg %p218
        %p590 = pneg %p242
        %p591 = pneg %p239
        %p592 = pneg %p263
        %p593 = pneg %p260
        %p594 = pneg %p284
        %p595 = pneg %p281
        %p596 = pneg %p305
        %p597 = pneg %p302
        %p598 = pneg %p326
        %p599 = pneg %p323
        %p600 = pneg %p354
        %p601 = pneg %p351
        %s602 = sand.u32 %s341, 1
        %s603 = scalar_lea.sflag [#allocation5], %s602
        %s604 = sand.u32 %s341, 1
        %s605 = smul.addr %s604, 8
        %s606 = scalar_lea.vmem [#allocation15], %s605
        %p607 = scmp.eq.s32.totalorder %s43, 0
        // Predicated region
        $region97: #{tpu_custom_call.1} parent=67 // pred_check
          %p608 = pneg %p607
        $region98: #{tpu_custom_call.1} parent=67 // pred_check_branch
          %610 = sbr.rel (%p608) target = $region100
        $region99: #{tpu_custom_call.1} parent=67 // pred_region
          %vm611 = vcmask 261120
          %612 = vst.msk [vmem:[#allocation2] sm:$0xff] %vm611, 0.0
        $region100: #{tpu_custom_call.1} parent=67 // pred_fallthru
          _
        %v613 = vld [vmem:[%s512] sm:$0xff]
        %v614 = vld [vmem:[%s521] sm:$0xff]
        %v615 = vld [vmem:[%s530] sm:$0xff]
        %v616 = vld [vmem:[%s539] sm:$0xff]
        %s617 = smul.u32 %s43, 32
        %s618 = scalar_lea.vmem [#allocation11], %s617
        %v619 = vld [vmem:[%s618] sm:$0xff]
        %v620 = vld [vmem:[%s618 + $0x8] sm:$0xff]
        %v621 = vld [vmem:[%s618 + $0x10] sm:$0xff]
        %v622 = vld [vmem:[%s618 + $0x18] sm:$0xff]
        %s623 = scalar_lea.vmem [#allocation12], %s617
        %v624 = vld [vmem:[%s623] sm:$0xff]
        %v625 = vld [vmem:[%s623 + $0x8] sm:$0xff]
        %v626 = vld [vmem:[%s623 + $0x10] sm:$0xff]
        %v627 = vld [vmem:[%s623 + $0x18] sm:$0xff]
        %s628 = scalar_lea.vmem [#allocation14], %s617
        %v629 = vld [vmem:[%s628] sm:$0xff]
        %v630 = vld [vmem:[%s628 + $0x8] sm:$0xff]
        %v631 = vld [vmem:[%s628 + $0x10] sm:$0xff]
        %v632 = vld [vmem:[%s628 + $0x18] sm:$0xff]
        %s633 = scalar_lea.vmem %s10, %s617
        %v634 = vld [vmem:[%s633] sm:$0xff]
        %v635 = vld [vmem:[%s633 + $0x8] sm:$0xff]
        %v636 = vld [vmem:[%s633 + $0x10] sm:$0xff]
        %v637 = vld [vmem:[%s633 + $0x18] sm:$0xff]
        %s638 = scalar_lea.vmem %s5, %s43
        %v639 = vld [vmem:[%s638] sm:$0x1]
        %s640 = scalar_lea.vmem %s7, %s43
        %v641 = vld [vmem:[%s640] sm:$0x1]
        %s642 = scalar_lea.vmem %s9, %s43
        %v643 = vld [vmem:[%s642] sm:$0x1]
        %v645 = vlaneseq
        %v646 = vshrl.u32 %v645, 7
        %v647 = vsub.s32 0, %v646
        %v648 = vrot.slane %v639, %v647
        %vm650 = vcmask 261120
        %v652 = vsel %vm650, %v613, 0
        %654 = vmatprep.subr.mxu0 0.0
        %655 = vmatpush1.msra.mxu0 %v619
        %656 = vmatprep.subr.mxu0 0.0
        %657 = vmatpush1.msra.mxu0 %v620
        %658 = vmatprep.subr.mxu0 0.0
        %659 = vmatpush1.msra.mxu0 %v621
        %660 = vmatprep.subr.mxu0 0.0
        %661 = vmatpush1.msra.mxu0 %v622
        %662 = vmatprep.subr.mxu0 0.0
        %663 = vmatpush1.msra.mxu0 0.0
        %664 = vmatprep.subr.mxu0 0.0
        %665 = vmatpush1.msra.mxu0 0.0
        %666 = vmatprep.subr.mxu0 0.0
        %667 = vmatpush1.msra.mxu0 0.0
        %668 = vmatprep.subr.mxu0 0.0
        %669 = vmatpush1.msra.mxu0 0.0
        %670 = vmatprep.subr.mxu0 0.0
        %671 = vmatpush1.msra.mxu0 0.0
        %672 = vmatprep.subr.mxu0 0.0
        %673 = vmatpush1.msra.mxu0 0.0
        %674 = vmatprep.subr.mxu0 0.0
        %675 = vmatpush1.msra.mxu0 0.0
        %676 = vmatprep.subr.mxu0 0.0
        %677 = vmatpush1.msra.mxu0 0.0
        %678 = vmatprep.subr.mxu0 0.0
        %679 = vmatpush1.msra.mxu0 0.0
        %680 = vmatprep.subr.mxu0 0.0
        %681 = vmatpush1.msra.mxu0 0.0
        %682 = vmatprep.subr.mxu0 0.0
        %683 = vmatpush1.msra.mxu0 0.0
        %684 = vmatprep.subr.mxu0 0.0
        %685 = vmatpush1.msra.mxu0 0.0
        %686 = vmatprep.subr.mxu0 0.0
        %687 = vmatpush1.msra.mxu0 0.0
        %688 = vmatprep.subr.mxu0 0.0
        %689 = vmatpush1.msra.mxu0 0.0
        %690 = vmatprep.subr.mxu0 0.0
        %691 = vmatpush1.msra.mxu0 0.0
        %692 = vmatprep.subr.mxu0 0.0
        %693 = vmatpush1.msra.mxu0 0.0
        %694 = vmatprep.subr.mxu0 0.0
        %695 = vmatpush1.msra.mxu0 0.0
        %696 = vmatprep.subr.mxu0 0.0
        %697 = vmatpush1.msra.mxu0 0.0
        %698 = vmatprep.subr.mxu0 0.0
        %699 = vmatpush1.msra.mxu0 0.0
        %700 = vmatprep.subr.mxu0 0.0
        %701 = vmatpush1.msra.mxu0 0.0
        %702 = vmatprep.subr.mxu0 0.0
        %703 = vmatpush1.msra.mxu0 0.0
        %704 = vmatprep.subr.mxu0 0.0
        %705 = vmatpush1.msra.mxu0 0.0
        %706 = vmatprep.subr.mxu0 0.0
        %707 = vmatpush1.msra.mxu0 0.0
        %708 = vmatprep.subr.mxu0 0.0
        %709 = vmatpush1.msra.mxu0 0.0
        %710 = vmatprep.subr.mxu0 0.0
        %711 = vmatpush1.msra.mxu0 0.0
        %712 = vmatprep.subr.mxu0 0.0
        %713 = vmatpush1.msra.mxu0 0.0
        %714 = vmatprep.subr.mxu0 0.0
        %715 = vmatpush1.msra.mxu0 0.0
        %716 = vmatprep.subr.mxu0 0.0
        %717 = vmatpush1.msra.mxu0 0.0
        %718 = vmatprep.mubr.f32.mxu0 0.0
        %719 = vmatmul.mubr.f32.gmra.mrb[0].mxu0 %v652
        %v720 = vpop.f32.mrb[0].mxu0
        %v721 = vadd.f32 %v648, %v720
        %v722 = vpop.f32.mrb[0].mxu0
        %723 = vdwg.mxu0
        %v725 = vlaneseq
        %v726 = vshrl.u32 %v725, 7
        %v727 = vsub.s32 0, %v726
        %v728 = vrot.slane %v641, %v727
        %v731 = vsel %vm650, %v614, 0
        %733 = vmatprep.subr.mxu0 0.0
        %734 = vmatpush1.msra.mxu0 %v624
        %735 = vmatprep.subr.mxu0 0.0
        %736 = vmatpush1.msra.mxu0 %v625
        %737 = vmatprep.subr.mxu0 0.0
        %738 = vmatpush1.msra.mxu0 %v626
        %739 = vmatprep.subr.mxu0 0.0
        %740 = vmatpush1.msra.mxu0 %v627
        %741 = vmatprep.subr.mxu0 0.0
        %742 = vmatpush1.msra.mxu0 0.0
        %743 = vmatprep.subr.mxu0 0.0
        %744 = vmatpush1.msra.mxu0 0.0
        %745 = vmatprep.subr.mxu0 0.0
        %746 = vmatpush1.msra.mxu0 0.0
        %747 = vmatprep.subr.mxu0 0.0
        %748 = vmatpush1.msra.mxu0 0.0
        %749 = vmatprep.subr.mxu0 0.0
        %750 = vmatpush1.msra.mxu0 0.0
        %751 = vmatprep.subr.mxu0 0.0
        %752 = vmatpush1.msra.mxu0 0.0
        %753 = vmatprep.subr.mxu0 0.0
        %754 = vmatpush1.msra.mxu0 0.0
        %755 = vmatprep.subr.mxu0 0.0
        %756 = vmatpush1.msra.mxu0 0.0
        %757 = vmatprep.subr.mxu0 0.0
        %758 = vmatpush1.msra.mxu0 0.0
        %759 = vmatprep.subr.mxu0 0.0
        %760 = vmatpush1.msra.mxu0 0.0
        %761 = vmatprep.subr.mxu0 0.0
        %762 = vmatpush1.msra.mxu0 0.0
        %763 = vmatprep.subr.mxu0 0.0
        %764 = vmatpush1.msra.mxu0 0.0
        %765 = vmatprep.subr.mxu0 0.0
        %766 = vmatpush1.msra.mxu0 0.0
        %767 = vmatprep.subr.mxu0 0.0
        %768 = vmatpush1.msra.mxu0 0.0
        %769 = vmatprep.subr.mxu0 0.0
        %770 = vmatpush1.msra.mxu0 0.0
        %771 = vmatprep.subr.mxu0 0.0
        %772 = vmatpush1.msra.mxu0 0.0
        %773 = vmatprep.subr.mxu0 0.0
        %774 = vmatpush1.msra.mxu0 0.0
        %775 = vmatprep.subr.mxu0 0.0
        %776 = vmatpush1.msra.mxu0 0.0
        %777 = vmatprep.subr.mxu0 0.0
        %778 = vmatpush1.msra.mxu0 0.0
        %779 = vmatprep.subr.mxu0 0.0
        %780 = vmatpush1.msra.mxu0 0.0
        %781 = vmatprep.subr.mxu0 0.0
        %782 = vmatpush1.msra.mxu0 0.0
        %783 = vmatprep.subr.mxu0 0.0
        %784 = vmatpush1.msra.mxu0 0.0
        %785 = vmatprep.subr.mxu0 0.0
        %786 = vmatpush1.msra.mxu0 0.0
        %787 = vmatprep.subr.mxu0 0.0
        %788 = vmatpush1.msra.mxu0 0.0
        %789 = vmatprep.subr.mxu0 0.0
        %790 = vmatpush1.msra.mxu0 0.0
        %791 = vmatprep.subr.mxu0 0.0
        %792 = vmatpush1.msra.mxu0 0.0
        %793 = vmatprep.subr.mxu0 0.0
        %794 = vmatpush1.msra.mxu0 0.0
        %795 = vmatprep.subr.mxu0 0.0
        %796 = vmatpush1.msra.mxu0 0.0
        %797 = vmatprep.mubr.f32.mxu0 0.0
        %798 = vmatmul.mubr.f32.gmra.mrb[0].mxu0 %v731
        %v799 = vpop.f32.mrb[0].mxu0
        %v800 = vadd.f32 %v728, %v799
        %v801 = vpop.f32.mrb[0].mxu0
        %802 = vdwg.mxu0
        %v804 = vlaneseq
        %v805 = vshrl.u32 %v804, 7
        %v806 = vsub.s32 0, %v805
        %v807 = vrot.slane %v643, %v806
        %v810 = vsel %vm650, %v615, 0
        %812 = vmatprep.subr.mxu0 0.0
        %813 = vmatpush1.msra.mxu0 %v629
        %814 = vmatprep.subr.mxu0 0.0
        %815 = vmatpush1.msra.mxu0 %v630
        %816 = vmatprep.subr.mxu0 0.0
        %817 = vmatpush1.msra.mxu0 %v631
        %818 = vmatprep.subr.mxu0 0.0
        %819 = vmatpush1.msra.mxu0 %v632
        %820 = vmatprep.subr.mxu0 0.0
        %821 = vmatpush1.msra.mxu0 0.0
        %822 = vmatprep.subr.mxu0 0.0
        %823 = vmatpush1.msra.mxu0 0.0
        %824 = vmatprep.subr.mxu0 0.0
        %825 = vmatpush1.msra.mxu0 0.0
        %826 = vmatprep.subr.mxu0 0.0
        %827 = vmatpush1.msra.mxu0 0.0
        %828 = vmatprep.subr.mxu0 0.0
        %829 = vmatpush1.msra.mxu0 0.0
        %830 = vmatprep.subr.mxu0 0.0
        %831 = vmatpush1.msra.mxu0 0.0
        %832 = vmatprep.subr.mxu0 0.0
        %833 = vmatpush1.msra.mxu0 0.0
        %834 = vmatprep.subr.mxu0 0.0
        %835 = vmatpush1.msra.mxu0 0.0
        %836 = vmatprep.subr.mxu0 0.0
        %837 = vmatpush1.msra.mxu0 0.0
        %838 = vmatprep.subr.mxu0 0.0
        %839 = vmatpush1.msra.mxu0 0.0
        %840 = vmatprep.subr.mxu0 0.0
        %841 = vmatpush1.msra.mxu0 0.0
        %842 = vmatprep.subr.mxu0 0.0
        %843 = vmatpush1.msra.mxu0 0.0
        %844 = vmatprep.subr.mxu0 0.0
        %845 = vmatpush1.msra.mxu0 0.0
        %846 = vmatprep.subr.mxu0 0.0
        %847 = vmatpush1.msra.mxu0 0.0
        %848 = vmatprep.subr.mxu0 0.0
        %849 = vmatpush1.msra.mxu0 0.0
        %850 = vmatprep.subr.mxu0 0.0
        %851 = vmatpush1.msra.mxu0 0.0
        %852 = vmatprep.subr.mxu0 0.0
        %853 = vmatpush1.msra.mxu0 0.0
        %854 = vmatprep.subr.mxu0 0.0
        %855 = vmatpush1.msra.mxu0 0.0
        %856 = vmatprep.subr.mxu0 0.0
        %857 = vmatpush1.msra.mxu0 0.0
        %858 = vmatprep.subr.mxu0 0.0
        %859 = vmatpush1.msra.mxu0 0.0
        %860 = vmatprep.subr.mxu0 0.0
        %861 = vmatpush1.msra.mxu0 0.0
        %862 = vmatprep.subr.mxu0 0.0
        %863 = vmatpush1.msra.mxu0 0.0
        %864 = vmatprep.subr.mxu0 0.0
        %865 = vmatpush1.msra.mxu0 0.0
        %866 = vmatprep.subr.mxu0 0.0
        %867 = vmatpush1.msra.mxu0 0.0
        %868 = vmatprep.subr.mxu0 0.0
        %869 = vmatpush1.msra.mxu0 0.0
        %870 = vmatprep.subr.mxu0 0.0
        %871 = vmatpush1.msra.mxu0 0.0
        %872 = vmatprep.subr.mxu0 0.0
        %873 = vmatpush1.msra.mxu0 0.0
        %874 = vmatprep.subr.mxu0 0.0
        %875 = vmatpush1.msra.mxu0 0.0
        %876 = vmatprep.mubr.f32.mxu0 0.0
        %877 = vmatmul.mubr.f32.gmra.mrb[0].mxu0 %v810
        %v878 = vpop.f32.mrb[0].mxu0
        %v879 = vadd.f32 %v807, %v878
        %v880 = vpop.f32.mrb[0].mxu0
        %881 = vdwg.mxu0
        %v882 = vmul.f32 %v721, 0.35355338
        %vm883 = vcmask 64512
        %v885 = vsel %vm883, %v882, 0
        %v888 = vsel %vm883, %v800, 0
        %890 = vmatprep.subr.mxu0 0.0
        %891 = vmatpush1.xpose.msra.mxu0 %v888
        %892 = vmatprep.subr.mxu0 0.0
        %893 = vmatpush1.xpose.msra.mxu0 0.0
        %894 = vmatprep.subr.mxu0 0.0
        %895 = vmatpush1.xpose.msra.mxu0 0.0
        %896 = vmatprep.subr.mxu0 0.0
        %897 = vmatpush1.xpose.msra.mxu0 0.0
        %898 = vmatprep.subr.mxu0 0.0
        %899 = vmatpush1.xpose.msra.mxu0 0.0
        %900 = vmatprep.subr.mxu0 0.0
        %901 = vmatpush1.xpose.msra.mxu0 0.0
        %902 = vmatprep.subr.mxu0 0.0
        %903 = vmatpush1.xpose.msra.mxu0 0.0
        %904 = vmatprep.subr.mxu0 0.0
        %905 = vmatpush1.xpose.msra.mxu0 0.0
        %906 = vmatprep.subr.mxu0 0.0
        %907 = vmatpush1.xpose.msra.mxu0 0.0
        %908 = vmatprep.subr.mxu0 0.0
        %909 = vmatpush1.xpose.msra.mxu0 0.0
        %910 = vmatprep.subr.mxu0 0.0
        %911 = vmatpush1.xpose.msra.mxu0 0.0
        %912 = vmatprep.subr.mxu0 0.0
        %913 = vmatpush1.xpose.msra.mxu0 0.0
        %914 = vmatprep.subr.mxu0 0.0
        %915 = vmatpush1.xpose.msra.mxu0 0.0
        %916 = vmatprep.subr.mxu0 0.0
        %917 = vmatpush1.xpose.msra.mxu0 0.0
        %918 = vmatprep.subr.mxu0 0.0
        %919 = vmatpush1.xpose.msra.mxu0 0.0
        %920 = vmatprep.subr.mxu0 0.0
        %921 = vmatpush1.xpose.msra.mxu0 0.0
        %922 = vmatprep.subr.mxu0 0.0
        %923 = vmatpush1.xpose.msra.mxu0 0.0
        %924 = vmatprep.subr.mxu0 0.0
        %925 = vmatpush1.xpose.msra.mxu0 0.0
        %926 = vmatprep.subr.mxu0 0.0
        %927 = vmatpush1.xpose.msra.mxu0 0.0
        %928 = vmatprep.subr.mxu0 0.0
        %929 = vmatpush1.xpose.msra.mxu0 0.0
        %930 = vmatprep.subr.mxu0 0.0
        %931 = vmatpush1.xpose.msra.mxu0 0.0
        %932 = vmatprep.subr.mxu0 0.0
        %933 = vmatpush1.xpose.msra.mxu0 0.0
        %934 = vmatprep.subr.mxu0 0.0
        %935 = vmatpush1.xpose.msra.mxu0 0.0
        %936 = vmatprep.subr.mxu0 0.0
        %937 = vmatpush1.xpose.msra.mxu0 0.0
        %938 = vmatprep.subr.mxu0 0.0
        %939 = vmatpush1.xpose.msra.mxu0 0.0
        %940 = vmatprep.subr.mxu0 0.0
        %941 = vmatpush1.xpose.msra.mxu0 0.0
        %942 = vmatprep.subr.mxu0 0.0
        %943 = vmatpush1.xpose.msra.mxu0 0.0
        %944 = vmatprep.subr.mxu0 0.0
        %945 = vmatpush1.xpose.msra.mxu0 0.0
        %946 = vmatprep.subr.mxu0 0.0
        %947 = vmatpush1.xpose.msra.mxu0 0.0
        %948 = vmatprep.subr.mxu0 0.0
        %949 = vmatpush1.xpose.msra.mxu0 0.0
        %950 = vmatprep.subr.mxu0 0.0
        %951 = vmatpush1.xpose.msra.mxu0 0.0
        %952 = vmatprep.subr.mxu0 0.0
        %953 = vmatpush1.xpose.msra.mxu0 0.0
        %954 = vmatprep.mubr.f32.mxu0 0.0
        %955 = vmatmul.mubr.f32.gmra.mrb[0].mxu0 %v885
        %v956 = vpop.f32.mrb[0].mxu0
        %v957 = vadd.f32 0.0, %v956
        %v958 = vpop.f32.mrb[0].mxu0
        %959 = vdwg.mxu0
        %vm960 = vcmp.eq.f32.partialorder %v616, 0.0
        %v961 = vsel %vm960, 1e-09, %v957
        %v962 = vsel %vm883, %v961, -inf
        %963 = vmax.xlane.f32.xlu0 %v962
        %v964 = vpop.xlane.xlu0 %963
        %v965 = vsub.f32 %v961, %v964
        %v966 = vmul.f32 %v965, 1.442695
        %v967 = vpow.pop %v966
        %v968 = vsel %vm883, %v967, 0.0
        %969 = vadd.xlane.f32.xlu0 %v968
        %v970 = vpop.xlane.xlu0 %969
        %v971 = vrcp.pop %v970
        %v972 = vmul.f32 %v967, %v971
        %v974 = vsel %vm883, %v972, 0
        %976 = vmatprep.subr.mxu0 0.0
        %977 = vmatpush1.msra.mxu0 %v879
        %978 = vmatprep.subr.mxu0 0.0
        %979 = vmatpush1.msra.mxu0 0.0
        %980 = vmatprep.subr.mxu0 0.0
        %981 = vmatpush1.msra.mxu0 0.0
        %982 = vmatprep.subr.mxu0 0.0
        %983 = vmatpush1.msra.mxu0 0.0
        %984 = vmatprep.subr.mxu0 0.0
        %985 = vmatpush1.msra.mxu0 0.0
        %986 = vmatprep.subr.mxu0 0.0
        %987 = vmatpush1.msra.mxu0 0.0
        %988 = vmatprep.subr.mxu0 0.0
        %989 = vmatpush1.msra.mxu0 0.0
        %990 = vmatprep.subr.mxu0 0.0
        %991 = vmatpush1.msra.mxu0 0.0
        %992 = vmatprep.subr.mxu0 0.0
        %993 = vmatpush1.msra.mxu0 0.0
        %994 = vmatprep.subr.mxu0 0.0
        %995 = vmatpush1.msra.mxu0 0.0
        %996 = vmatprep.subr.mxu0 0.0
        %997 = vmatpush1.msra.mxu0 0.0
        %998 = vmatprep.subr.mxu0 0.0
        %999 = vmatpush1.msra.mxu0 0.0
        %1000 = vmatprep.subr.mxu0 0.0
        %1001 = vmatpush1.msra.mxu0 0.0
        %1002 = vmatprep.subr.mxu0 0.0
        %1003 = vmatpush1.msra.mxu0 0.0
        %1004 = vmatprep.subr.mxu0 0.0
        %1005 = vmatpush1.msra.mxu0 0.0
        %1006 = vmatprep.subr.mxu0 0.0
        %1007 = vmatpush1.msra.mxu0 0.0
        %1008 = vmatprep.subr.mxu0 0.0
        %1009 = vmatpush1.msra.mxu0 0.0
        %1010 = vmatprep.subr.mxu0 0.0
        %1011 = vmatpush1.msra.mxu0 0.0
        %1012 = vmatprep.subr.mxu0 0.0
        %1013 = vmatpush1.msra.mxu0 0.0
        %1014 = vmatprep.subr.mxu0 0.0
        %1015 = vmatpush1.msra.mxu0 0.0
        %1016 = vmatprep.subr.mxu0 0.0
        %1017 = vmatpush1.msra.mxu0 0.0
        %1018 = vmatprep.subr.mxu0 0.0
        %1019 = vmatpush1.msra.mxu0 0.0
        %1020 = vmatprep.subr.mxu0 0.0
        %1021 = vmatpush1.msra.mxu0 0.0
        %1022 = vmatprep.subr.mxu0 0.0
        %1023 = vmatpush1.msra.mxu0 0.0
        %1024 = vmatprep.subr.mxu0 0.0
        %1025 = vmatpush1.msra.mxu0 0.0
        %1026 = vmatprep.subr.mxu0 0.0
        %1027 = vmatpush1.msra.mxu0 0.0
        %1028 = vmatprep.subr.mxu0 0.0
        %1029 = vmatpush1.msra.mxu0 0.0
        %1030 = vmatprep.subr.mxu0 0.0
        %1031 = vmatpush1.msra.mxu0 0.0
        %1032 = vmatprep.subr.mxu0 0.0
        %1033 = vmatpush1.msra.mxu0 0.0
        %1034 = vmatprep.subr.mxu0 0.0
        %1035 = vmatpush1.msra.mxu0 0.0
        %1036 = vmatprep.subr.mxu0 0.0
        %1037 = vmatpush1.msra.mxu0 0.0
        %1038 = vmatprep.subr.mxu0 0.0
        %1039 = vmatpush1.msra.mxu0 0.0
        %1040 = vmatprep.mubr.f32.mxu0 0.0
        %1041 = vmatmul.mubr.f32.gmra.mrb[0].mxu0 %v974
        %v1042 = vpop.f32.mrb[0].mxu0
        %v1043 = vadd.f32 0.0, %v1042
        %v1044 = vpop.f32.mrb[0].mxu0
        %1045 = vdwg.mxu0
        %1046 = vrot.lane.b32.xlu0 %v882, 120
        %v1047 = vpop.permute.xlu0 %1046
        %1048 = vrot.lane.b32.xlu0 %v800, 120
        %v1049 = vpop.permute.xlu0 %1048
        %v1050 = vsel %vm883, %v1047, 0
        %v1052 = vsel %vm883, %v1049, 0
        %1054 = vmatprep.subr.mxu0 0.0
        %1055 = vmatpush1.xpose.msra.mxu0 %v1052
        %1056 = vmatprep.subr.mxu0 0.0
        %1057 = vmatpush1.xpose.msra.mxu0 0.0
        %1058 = vmatprep.subr.mxu0 0.0
        %1059 = vmatpush1.xpose.msra.mxu0 0.0
        %1060 = vmatprep.subr.mxu0 0.0
        %1061 = vmatpush1.xpose.msra.mxu0 0.0
        %1062 = vmatprep.subr.mxu0 0.0
        %1063 = vmatpush1.xpose.msra.mxu0 0.0
        %1064 = vmatprep.subr.mxu0 0.0
        %1065 = vmatpush1.xpose.msra.mxu0 0.0
        %1066 = vmatprep.subr.mxu0 0.0
        %1067 = vmatpush1.xpose.msra.mxu0 0.0
        %1068 = vmatprep.subr.mxu0 0.0
        %1069 = vmatpush1.xpose.msra.mxu0 0.0
        %1070 = vmatprep.subr.mxu0 0.0
        %1071 = vmatpush1.xpose.msra.mxu0 0.0
        %1072 = vmatprep.subr.mxu0 0.0
        %1073 = vmatpush1.xpose.msra.mxu0 0.0
        %1074 = vmatprep.subr.mxu0 0.0
        %1075 = vmatpush1.xpose.msra.mxu0 0.0
        %1076 = vmatprep.subr.mxu0 0.0
        %1077 = vmatpush1.xpose.msra.mxu0 0.0
        %1078 = vmatprep.subr.mxu0 0.0
        %1079 = vmatpush1.xpose.msra.mxu0 0.0
        %1080 = vmatprep.subr.mxu0 0.0
        %1081 = vmatpush1.xpose.msra.mxu0 0.0
        %1082 = vmatprep.subr.mxu0 0.0
        %1083 = vmatpush1.xpose.msra.mxu0 0.0
        %1084 = vmatprep.subr.mxu0 0.0
        %1085 = vmatpush1.xpose.msra.mxu0 0.0
        %1086 = vmatprep.subr.mxu0 0.0
        %1087 = vmatpush1.xpose.msra.mxu0 0.0
        %1088 = vmatprep.subr.mxu0 0.0
        %1089 = vmatpush1.xpose.msra.mxu0 0.0
        %1090 = vmatprep.subr.mxu0 0.0
        %1091 = vmatpush1.xpose.msra.mxu0 0.0
        %1092 = vmatprep.subr.mxu0 0.0
        %1093 = vmatpush1.xpose.msra.mxu0 0.0
        %1094 = vmatprep.subr.mxu0 0.0
        %1095 = vmatpush1.xpose.msra.mxu0 0.0
        %1096 = vmatprep.subr.mxu0 0.0
        %1097 = vmatpush1.xpose.msra.mxu0 0.0
        %1098 = vmatprep.subr.mxu0 0.0
        %1099 = vmatpush1.xpose.msra.mxu0 0.0
        %1100 = vmatprep.subr.mxu0 0.0
        %1101 = vmatpush1.xpose.msra.mxu0 0.0
        %1102 = vmatprep.subr.mxu0 0.0
        %1103 = vmatpush1.xpose.msra.mxu0 0.0
        %1104 = vmatprep.subr.mxu0 0.0
        %1105 = vmatpush1.xpose.msra.mxu0 0.0
        %1106 = vmatprep.subr.mxu0 0.0
        %1107 = vmatpush1.xpose.msra.mxu0 0.0
        %1108 = vmatprep.subr.mxu0 0.0
        %1109 = vmatpush1.xpose.msra.mxu0 0.0
        %1110 = vmatprep.subr.mxu0 0.0
        %1111 = vmatpush1.xpose.msra.mxu0 0.0
        %1112 = vmatprep.subr.mxu0 0.0
        %1113 = vmatpush1.xpose.msra.mxu0 0.0
        %1114 = vmatprep.subr.mxu0 0.0
        %1115 = vmatpush1.xpose.msra.mxu0 0.0
        %1116 = vmatprep.subr.mxu0 0.0
        %1117 = vmatpush1.xpose.msra.mxu0 0.0
        %1118 = vmatprep.mubr.f32.mxu0 0.0
        %1119 = vmatmul.mubr.f32.gmra.mrb[0].mxu0 %v1050
        %v1120 = vpop.f32.mrb[0].mxu0
        %v1121 = vadd.f32 0.0, %v1120
        %v1122 = vpop.f32.mrb[0].mxu0
        %1123 = vdwg.mxu0
        %v1124 = vsel %vm960, 1e-09, %v1121
        %v1125 = vsel %vm883, %v1124, -inf
        %1126 = vmax.xlane.f32.xlu0 %v1125
        %v1127 = vpop.xlane.xlu0 %1126
        %v1128 = vsub.f32 %v1124, %v1127
        %v1129 = vmul.f32 %v1128, 1.442695
        %v1130 = vpow.pop %v1129
        %v1131 = vsel %vm883, %v1130, 0.0
        %1132 = vadd.xlane.f32.xlu0 %v1131
        %v1133 = vpop.xlane.xlu0 %1132
        %v1134 = vrcp.pop %v1133
        %v1135 = vmul.f32 %v1130, %v1134
        %1137 = vrot.lane.b32.xlu0 %v879, 120
        %v1138 = vpop.permute.xlu0 %1137
        %v1141 = vsel %vm883, %v1135, 0
        %1143 = vmatprep.subr.mxu0 0.0
        %1144 = vmatpush1.msra.mxu0 %v1138
        %1145 = vmatprep.subr.mxu0 0.0
        %1146 = vmatpush1.msra.mxu0 0.0
        %1147 = vmatprep.subr.mxu0 0.0
        %1148 = vmatpush1.msra.mxu0 0.0
        %1149 = vmatprep.subr.mxu0 0.0
        %1150 = vmatpush1.msra.mxu0 0.0
        %1151 = vmatprep.subr.mxu0 0.0
        %1152 = vmatpush1.msra.mxu0 0.0
        %1153 = vmatprep.subr.mxu0 0.0
        %1154 = vmatpush1.msra.mxu0 0.0
        %1155 = vmatprep.subr.mxu0 0.0
        %1156 = vmatpush1.msra.mxu0 0.0
        %1157 = vmatprep.subr.mxu0 0.0
        %1158 = vmatpush1.msra.mxu0 0.0
        %1159 = vmatprep.subr.mxu0 0.0
        %1160 = vmatpush1.msra.mxu0 0.0
        %1161 = vmatprep.subr.mxu0 0.0
        %1162 = vmatpush1.msra.mxu0 0.0
        %1163 = vmatprep.subr.mxu0 0.0
        %1164 = vmatpush1.msra.mxu0 0.0
        %1165 = vmatprep.subr.mxu0 0.0
        %1166 = vmatpush1.msra.mxu0 0.0
        %1167 = vmatprep.subr.mxu0 0.0
        %1168 = vmatpush1.msra.mxu0 0.0
        %1169 = vmatprep.subr.mxu0 0.0
        %1170 = vmatpush1.msra.mxu0 0.0
        %1171 = vmatprep.subr.mxu0 0.0
        %1172 = vmatpush1.msra.mxu0 0.0
        %1173 = vmatprep.subr.mxu0 0.0
        %1174 = vmatpush1.msra.mxu0 0.0
        %1175 = vmatprep.subr.mxu0 0.0
        %1176 = vmatpush1.msra.mxu0 0.0
        %1177 = vmatprep.subr.mxu0 0.0
        %1178 = vmatpush1.msra.mxu0 0.0
        %1179 = vmatprep.subr.mxu0 0.0
        %1180 = vmatpush1.msra.mxu0 0.0
        %1181 = vmatprep.subr.mxu0 0.0
        %1182 = vmatpush1.msra.mxu0 0.0
        %1183 = vmatprep.subr.mxu0 0.0
        %1184 = vmatpush1.msra.mxu0 0.0
        %1185 = vmatprep.subr.mxu0 0.0
        %1186 = vmatpush1.msra.mxu0 0.0
        %1187 = vmatprep.subr.mxu0 0.0
        %1188 = vmatpush1.msra.mxu0 0.0
        %1189 = vmatprep.subr.mxu0 0.0
        %1190 = vmatpush1.msra.mxu0 0.0
        %1191 = vmatprep.subr.mxu0 0.0
        %1192 = vmatpush1.msra.mxu0 0.0
        %1193 = vmatprep.subr.mxu0 0.0
        %1194 = vmatpush1.msra.mxu0 0.0
        %1195 = vmatprep.subr.mxu0 0.0
        %1196 = vmatpush1.msra.mxu0 0.0
        %1197 = vmatprep.subr.mxu0 0.0
        %1198 = vmatpush1.msra.mxu0 0.0
        %1199 = vmatprep.subr.mxu0 0.0
        %1200 = vmatpush1.msra.mxu0 0.0
        %1201 = vmatprep.subr.mxu0 0.0
        %1202 = vmatpush1.msra.mxu0 0.0
        %1203 = vmatprep.subr.mxu0 0.0
        %1204 = vmatpush1.msra.mxu0 0.0
        %1205 = vmatprep.subr.mxu0 0.0
        %1206 = vmatpush1.msra.mxu0 0.0
        %1207 = vmatprep.mubr.f32.mxu0 0.0
        %1208 = vmatmul.mubr.f32.gmra.mrb[0].mxu0 %v1141
        %v1209 = vpop.f32.mrb[0].mxu0
        %v1210 = vadd.f32 0.0, %v1209
        %v1211 = vpop.f32.mrb[0].mxu0
        %1212 = vdwg.mxu0
        %1213 = vrot.lane.b32.xlu0 %v882, 112
        %v1214 = vpop.permute.xlu0 %1213
        %1215 = vrot.lane.b32.xlu0 %v800, 112
        %v1216 = vpop.permute.xlu0 %1215
        %v1217 = vsel %vm883, %v1214, 0
        %v1219 = vsel %vm883, %v1216, 0
        %1221 = vmatprep.subr.mxu0 0.0
        %1222 = vmatpush1.xpose.msra.mxu0 %v1219
        %1223 = vmatprep.subr.mxu0 0.0
        %1224 = vmatpush1.xpose.msra.mxu0 0.0
        %1225 = vmatprep.subr.mxu0 0.0
        %1226 = vmatpush1.xpose.msra.mxu0 0.0
        %1227 = vmatprep.subr.mxu0 0.0
        %1228 = vmatpush1.xpose.msra.mxu0 0.0
        %1229 = vmatprep.subr.mxu0 0.0
        %1230 = vmatpush1.xpose.msra.mxu0 0.0
        %1231 = vmatprep.subr.mxu0 0.0
        %1232 = vmatpush1.xpose.msra.mxu0 0.0
        %1233 = vmatprep.subr.mxu0 0.0
        %1234 = vmatpush1.xpose.msra.mxu0 0.0
        %1235 = vmatprep.subr.mxu0 0.0
        %1236 = vmatpush1.xpose.msra.mxu0 0.0
        %1237 = vmatprep.subr.mxu0 0.0
        %1238 = vmatpush1.xpose.msra.mxu0 0.0
        %1239 = vmatprep.subr.mxu0 0.0
        %1240 = vmatpush1.xpose.msra.mxu0 0.0
        %1241 = vmatprep.subr.mxu0 0.0
        %1242 = vmatpush1.xpose.msra.mxu0 0.0
        %1243 = vmatprep.subr.mxu0 0.0
        %1244 = vmatpush1.xpose.msra.mxu0 0.0
        %1245 = vmatprep.subr.mxu0 0.0
        %1246 = vmatpush1.xpose.msra.mxu0 0.0
        %1247 = vmatprep.subr.mxu0 0.0
        %1248 = vmatpush1.xpose.msra.mxu0 0.0
        %1249 = vmatprep.subr.mxu0 0.0
        %1250 = vmatpush1.xpose.msra.mxu0 0.0
        %1251 = vmatprep.subr.mxu0 0.0
        %1252 = vmatpush1.xpose.msra.mxu0 0.0
        %1253 = vmatprep.subr.mxu0 0.0
        %1254 = vmatpush1.xpose.msra.mxu0 0.0
        %1255 = vmatprep.subr.mxu0 0.0
        %1256 = vmatpush1.xpose.msra.mxu0 0.0
        %1257 = vmatprep.subr.mxu0 0.0
        %1258 = vmatpush1.xpose.msra.mxu0 0.0
        %1259 = vmatprep.subr.mxu0 0.0
        %1260 = vmatpush1.xpose.msra.mxu0 0.0
        %1261 = vmatprep.subr.mxu0 0.0
        %1262 = vmatpush1.xpose.msra.mxu0 0.0
        %1263 = vmatprep.subr.mxu0 0.0
        %1264 = vmatpush1.xpose.msra.mxu0 0.0
        %1265 = vmatprep.subr.mxu0 0.0
        %1266 = vmatpush1.xpose.msra.mxu0 0.0
        %1267 = vmatprep.subr.mxu0 0.0
        %1268 = vmatpush1.xpose.msra.mxu0 0.0
        %1269 = vmatprep.subr.mxu0 0.0
        %1270 = vmatpush1.xpose.msra.mxu0 0.0
        %1271 = vmatprep.subr.mxu0 0.0
        %1272 = vmatpush1.xpose.msra.mxu0 0.0
        %1273 = vmatprep.subr.mxu0 0.0
        %1274 = vmatpush1.xpose.msra.mxu0 0.0
        %1275 = vmatprep.subr.mxu0 0.0
        %1276 = vmatpush1.xpose.msra.mxu0 0.0
        %1277 = vmatprep.subr.mxu0 0.0
        %1278 = vmatpush1.xpose.msra.mxu0 0.0
        %1279 = vmatprep.subr.mxu0 0.0
        %1280 = vmatpush1.xpose.msra.mxu0 0.0
        %1281 = vmatprep.subr.mxu0 0.0
        %1282 = vmatpush1.xpose.msra.mxu0 0.0
        %1283 = vmatprep.subr.mxu0 0.0
        %1284 = vmatpush1.xpose.msra.mxu0 0.0
        %1285 = vmatprep.mubr.f32.mxu0 0.0
        %1286 = vmatmul.mubr.f32.gmra.mrb[0].mxu0 %v1217
        %v1287 = vpop.f32.mrb[0].mxu0
        %v1288 = vadd.f32 0.0, %v1287
        %v1289 = vpop.f32.mrb[0].mxu0
        %1290 = vdwg.mxu0
        %v1291 = vsel %vm960, 1e-09, %v1288
        %v1292 = vsel %vm883, %v1291, -inf
        %1293 = vmax.xlane.f32.xlu0 %v1292
        %v1294 = vpop.xlane.xlu0 %1293
        %v1295 = vsub.f32 %v1291, %v1294
        %v1296 = vmul.f32 %v1295, 1.442695
        %v1297 = vpow.pop %v1296
        %v1298 = vsel %vm883, %v1297, 0.0
        %1299 = vadd.xlane.f32.xlu0 %v1298
        %v1300 = vpop.xlane.xlu0 %1299
        %v1301 = vrcp.pop %v1300
        %v1302 = vmul.f32 %v1297, %v1301
        %1303 = vrot.lane.b32.xlu0 %v879, 112
        %v1304 = vpop.permute.xlu0 %1303
        %v1307 = vsel %vm883, %v1302, 0
        %1309 = vmatprep.subr.mxu0 0.0
        %1310 = vmatpush1.msra.mxu0 %v1304
        %1311 = vmatprep.subr.mxu0 0.0
        %1312 = vmatpush1.msra.mxu0 0.0
        %1313 = vmatprep.subr.mxu0 0.0
        %1314 = vmatpush1.msra.mxu0 0.0
        %1315 = vmatprep.subr.mxu0 0.0
        %1316 = vmatpush1.msra.mxu0 0.0
        %1317 = vmatprep.subr.mxu0 0.0
        %1318 = vmatpush1.msra.mxu0 0.0
        %1319 = vmatprep.subr.mxu0 0.0
        %1320 = vmatpush1.msra.mxu0 0.0
        %1321 = vmatprep.subr.mxu0 0.0
        %1322 = vmatpush1.msra.mxu0 0.0
        %1323 = vmatprep.subr.mxu0 0.0
        %1324 = vmatpush1.msra.mxu0 0.0
        %1325 = vmatprep.subr.mxu0 0.0
        %1326 = vmatpush1.msra.mxu0 0.0
        %1327 = vmatprep.subr.mxu0 0.0
        %1328 = vmatpush1.msra.mxu0 0.0
        %1329 = vmatprep.subr.mxu0 0.0
        %1330 = vmatpush1.msra.mxu0 0.0
        %1331 = vmatprep.subr.mxu0 0.0
        %1332 = vmatpush1.msra.mxu0 0.0
        %1333 = vmatprep.subr.mxu0 0.0
        %1334 = vmatpush1.msra.mxu0 0.0
        %1335 = vmatprep.subr.mxu0 0.0
        %1336 = vmatpush1.msra.mxu0 0.0
        %1337 = vmatprep.subr.mxu0 0.0
        %1338 = vmatpush1.msra.mxu0 0.0
        %1339 = vmatprep.subr.mxu0 0.0
        %1340 = vmatpush1.msra.mxu0 0.0
        %1341 = vmatprep.subr.mxu0 0.0
        %1342 = vmatpush1.msra.mxu0 0.0
        %1343 = vmatprep.subr.mxu0 0.0
        %1344 = vmatpush1.msra.mxu0 0.0
        %1345 = vmatprep.subr.mxu0 0.0
        %1346 = vmatpush1.msra.mxu0 0.0
        %1347 = vmatprep.subr.mxu0 0.0
        %1348 = vmatpush1.msra.mxu0 0.0
        %1349 = vmatprep.subr.mxu0 0.0
        %1350 = vmatpush1.msra.mxu0 0.0
        %1351 = vmatprep.subr.mxu0 0.0
        %1352 = vmatpush1.msra.mxu0 0.0
        %1353 = vmatprep.subr.mxu0 0.0
        %1354 = vmatpush1.msra.mxu0 0.0
        %1355 = vmatprep.subr.mxu0 0.0
        %1356 = vmatpush1.msra.mxu0 0.0
        %1357 = vmatprep.subr.mxu0 0.0
        %1358 = vmatpush1.msra.mxu0 0.0
        %1359 = vmatprep.subr.mxu0 0.0
        %1360 = vmatpush1.msra.mxu0 0.0
        %1361 = vmatprep.subr.mxu0 0.0
        %1362 = vmatpush1.msra.mxu0 0.0
        %1363 = vmatprep.subr.mxu0 0.0
        %1364 = vmatpush1.msra.mxu0 0.0
        %1365 = vmatprep.subr.mxu0 0.0
        %1366 = vmatpush1.msra.mxu0 0.0
        %1367 = vmatprep.subr.mxu0 0.0
        %1368 = vmatpush1.msra.mxu0 0.0
        %1369 = vmatprep.subr.mxu0 0.0
        %1370 = vmatpush1.msra.mxu0 0.0
        %1371 = vmatprep.subr.mxu0 0.0
        %1372 = vmatpush1.msra.mxu0 0.0
        %1373 = vmatprep.mubr.f32.mxu0 0.0
        %1374 = vmatmul.mubr.f32.gmra.mrb[0].mxu0 %v1307
        %v1375 = vpop.f32.mrb[0].mxu0
        %v1376 = vadd.f32 0.0, %v1375
        %v1377 = vpop.f32.mrb[0].mxu0
        %1378 = vdwg.mxu0
        %1379 = vrot.lane.b32.xlu0 %v882, 104
        %v1380 = vpop.permute.xlu0 %1379
        %1381 = vrot.lane.b32.xlu0 %v800, 104
        %v1382 = vpop.permute.xlu0 %1381
        %v1383 = vsel %vm883, %v1380, 0
        %v1385 = vsel %vm883, %v1382, 0
        %1387 = vmatprep.subr.mxu0 0.0
        %1388 = vmatpush1.xpose.msra.mxu0 %v1385
        %1389 = vmatprep.subr.mxu0 0.0
        %1390 = vmatpush1.xpose.msra.mxu0 0.0
        %1391 = vmatprep.subr.mxu0 0.0
        %1392 = vmatpush1.xpose.msra.mxu0 0.0
        %1393 = vmatprep.subr.mxu0 0.0
        %1394 = vmatpush1.xpose.msra.mxu0 0.0
        %1395 = vmatprep.subr.mxu0 0.0
        %1396 = vmatpush1.xpose.msra.mxu0 0.0
        %1397 = vmatprep.subr.mxu0 0.0
        %1398 = vmatpush1.xpose.msra.mxu0 0.0
        %1399 = vmatprep.subr.mxu0 0.0
        %1400 = vmatpush1.xpose.msra.mxu0 0.0
        %1401 = vmatprep.subr.mxu0 0.0
        %1402 = vmatpush1.xpose.msra.mxu0 0.0
        %1403 = vmatprep.subr.mxu0 0.0
        %1404 = vmatpush1.xpose.msra.mxu0 0.0
        %1405 = vmatprep.subr.mxu0 0.0
        %1406 = vmatpush1.xpose.msra.mxu0 0.0
        %1407 = vmatprep.subr.mxu0 0.0
        %1408 = vmatpush1.xpose.msra.mxu0 0.0
        %1409 = vmatprep.subr.mxu0 0.0
        %1410 = vmatpush1.xpose.msra.mxu0 0.0
        %1411 = vmatprep.subr.mxu0 0.0
        %1412 = vmatpush1.xpose.msra.mxu0 0.0
        %1413 = vmatprep.subr.mxu0 0.0
        %1414 = vmatpush1.xpose.msra.mxu0 0.0
        %1415 = vmatprep.subr.mxu0 0.0
        %1416 = vmatpush1.xpose.msra.mxu0 0.0
        %1417 = vmatprep.subr.mxu0 0.0
        %1418 = vmatpush1.xpose.msra.mxu0 0.0
        %1419 = vmatprep.subr.mxu0 0.0
        %1420 = vmatpush1.xpose.msra.mxu0 0.0
        %1421 = vmatprep.subr.mxu0 0.0
        %1422 = vmatpush1.xpose.msra.mxu0 0.0
        %1423 = vmatprep.subr.mxu0 0.0
        %1424 = vmatpush1.xpose.msra.mxu0 0.0
        %1425 = vmatprep.subr.mxu0 0.0
        %1426 = vmatpush1.xpose.msra.mxu0 0.0
        %1427 = vmatprep.subr.mxu0 0.0
        %1428 = vmatpush1.xpose.msra.mxu0 0.0
        %1429 = vmatprep.subr.mxu0 0.0
        %1430 = vmatpush1.xpose.msra.mxu0 0.0
        %1431 = vmatprep.subr.mxu0 0.0
        %1432 = vmatpush1.xpose.msra.mxu0 0.0
        %1433 = vmatprep.subr.mxu0 0.0
        %1434 = vmatpush1.xpose.msra.mxu0 0.0
        %1435 = vmatprep.subr.mxu0 0.0
        %1436 = vmatpush1.xpose.msra.mxu0 0.0
        %1437 = vmatprep.subr.mxu0 0.0
        %1438 = vmatpush1.xpose.msra.mxu0 0.0
        %1439 = vmatprep.subr.mxu0 0.0
        %1440 = vmatpush1.xpose.msra.mxu0 0.0
        %1441 = vmatprep.subr.mxu0 0.0
        %1442 = vmatpush1.xpose.msra.mxu0 0.0
        %1443 = vmatprep.subr.mxu0 0.0
        %1444 = vmatpush1.xpose.msra.mxu0 0.0
        %1445 = vmatprep.subr.mxu0 0.0
        %1446 = vmatpush1.xpose.msra.mxu0 0.0
        %1447 = vmatprep.subr.mxu0 0.0
        %1448 = vmatpush1.xpose.msra.mxu0 0.0
        %1449 = vmatprep.subr.mxu0 0.0
        %1450 = vmatpush1.xpose.msra.mxu0 0.0
        %1451 = vmatprep.mubr.f32.mxu0 0.0
        %1452 = vmatmul.mubr.f32.gmra.mrb[0].mxu0 %v1383
        %v1453 = vpop.f32.mrb[0].mxu0
        %v1454 = vadd.f32 0.0, %v1453
        %v1455 = vpop.f32.mrb[0].mxu0
        %1456 = vdwg.mxu0
        %v1457 = vsel %vm960, 1e-09, %v1454
        %v1458 = vsel %vm883, %v1457, -inf
        %1459 = vmax.xlane.f32.xlu0 %v1458
        %v1460 = vpop.xlane.xlu0 %1459
        %v1461 = vsub.f32 %v1457, %v1460
        %v1462 = vmul.f32 %v1461, 1.442695
        %v1463 = vpow.pop %v1462
        %v1464 = vsel %vm883, %v1463, 0.0
        %1465 = vadd.xlane.f32.xlu0 %v1464
        %v1466 = vpop.xlane.xlu0 %1465
        %v1467 = vrcp.pop %v1466
        %v1468 = vmul.f32 %v1463, %v1467
        %1469 = vrot.lane.b32.xlu0 %v879, 104
        %v1470 = vpop.permute.xlu0 %1469
        %v1473 = vsel %vm883, %v1468, 0
        %1475 = vmatprep.subr.mxu0 0.0
        %1476 = vmatpush1.msra.mxu0 %v1470
        %1477 = vmatprep.subr.mxu0 0.0
        %1478 = vmatpush1.msra.mxu0 0.0
        %1479 = vmatprep.subr.mxu0 0.0
        %1480 = vmatpush1.msra.mxu0 0.0
        %1481 = vmatprep.subr.mxu0 0.0
        %1482 = vmatpush1.msra.mxu0 0.0
        %1483 = vmatprep.subr.mxu0 0.0
        %1484 = vmatpush1.msra.mxu0 0.0
        %1485 = vmatprep.subr.mxu0 0.0
        %1486 = vmatpush1.msra.mxu0 0.0
        %1487 = vmatprep.subr.mxu0 0.0
        %1488 = vmatpush1.msra.mxu0 0.0
        %1489 = vmatprep.subr.mxu0 0.0
        %1490 = vmatpush1.msra.mxu0 0.0
        %1491 = vmatprep.subr.mxu0 0.0
        %1492 = vmatpush1.msra.mxu0 0.0
        %1493 = vmatprep.subr.mxu0 0.0
        %1494 = vmatpush1.msra.mxu0 0.0
        %1495 = vmatprep.subr.mxu0 0.0
        %1496 = vmatpush1.msra.mxu0 0.0
        %1497 = vmatprep.subr.mxu0 0.0
        %1498 = vmatpush1.msra.mxu0 0.0
        %1499 = vmatprep.subr.mxu0 0.0
        %1500 = vmatpush1.msra.mxu0 0.0
        %1501 = vmatprep.subr.mxu0 0.0
        %1502 = vmatpush1.msra.mxu0 0.0
        %1503 = vmatprep.subr.mxu0 0.0
        %1504 = vmatpush1.msra.mxu0 0.0
        %1505 = vmatprep.subr.mxu0 0.0
        %1506 = vmatpush1.msra.mxu0 0.0
        %1507 = vmatprep.subr.mxu0 0.0
        %1508 = vmatpush1.msra.mxu0 0.0
        %1509 = vmatprep.subr.mxu0 0.0
        %1510 = vmatpush1.msra.mxu0 0.0
        %1511 = vmatprep.subr.mxu0 0.0
        %1512 = vmatpush1.msra.mxu0 0.0
        %1513 = vmatprep.subr.mxu0 0.0
        %1514 = vmatpush1.msra.mxu0 0.0
        %1515 = vmatprep.subr.mxu0 0.0
        %1516 = vmatpush1.msra.mxu0 0.0
        %1517 = vmatprep.subr.mxu0 0.0
        %1518 = vmatpush1.msra.mxu0 0.0
        %1519 = vmatprep.subr.mxu0 0.0
        %1520 = vmatpush1.msra.mxu0 0.0
        %1521 = vmatprep.subr.mxu0 0.0
        %1522 = vmatpush1.msra.mxu0 0.0
        %1523 = vmatprep.subr.mxu0 0.0
        %1524 = vmatpush1.msra.mxu0 0.0
        %1525 = vmatprep.subr.mxu0 0.0
        %1526 = vmatpush1.msra.mxu0 0.0
        %1527 = vmatprep.subr.mxu0 0.0
        %1528 = vmatpush1.msra.mxu0 0.0
        %1529 = vmatprep.subr.mxu0 0.0
        %1530 = vmatpush1.msra.mxu0 0.0
        %1531 = vmatprep.subr.mxu0 0.0
        %1532 = vmatpush1.msra.mxu0 0.0
        %1533 = vmatprep.subr.mxu0 0.0
        %1534 = vmatpush1.msra.mxu0 0.0
        %1535 = vmatprep.subr.mxu0 0.0
        %1536 = vmatpush1.msra.mxu0 0.0
        %1537 = vmatprep.subr.mxu0 0.0
        %1538 = vmatpush1.msra.mxu0 0.0
        %1539 = vmatprep.mubr.f32.mxu0 0.0
        %1540 = vmatmul.mubr.f32.gmra.mrb[0].mxu0 %v1473
        %v1541 = vpop.f32.mrb[0].mxu0
        %v1542 = vadd.f32 0.0, %v1541
        %v1543 = vpop.f32.mrb[0].mxu0
        %1544 = vdwg.mxu0
        %1546 = vrot.lane.b32.xlu0 %v1210, 8
        %v1547 = vpop.permute.xlu0 %1546
        %1550 = vrot.lane.b32.xlu0 %v1376, 16
        %v1551 = vpop.permute.xlu0 %1550
        %1554 = vrot.lane.b32.xlu0 %v1542, 24
        %v1555 = vpop.permute.xlu0 %1554
        %v1557 = vsel %vm883, %v1043, %v1547
        %vm1558 = vcmask 130048
        %v1559 = vsel %vm1558, %v1557, %v1551
        %vm1560 = vcmask 195584
        %v1561 = vsel %vm1560, %v1559, %v1555
        %v1562 = vld [vmem:[#allocation2] sm:$0xff]
        %v1564 = vsel %vm650, %v1561, 0
        %1566 = vmatprep.subr.mxu0 0.0
        %1567 = vmatpush1.msra.mxu0 %v634
        %1568 = vmatprep.subr.mxu0 0.0
        %1569 = vmatpush1.msra.mxu0 %v635
        %1570 = vmatprep.subr.mxu0 0.0
        %1571 = vmatpush1.msra.mxu0 %v636
        %1572 = vmatprep.subr.mxu0 0.0
        %1573 = vmatpush1.msra.mxu0 %v637
        %1574 = vmatprep.subr.mxu0 0.0
        %1575 = vmatpush1.msra.mxu0 0.0
        %1576 = vmatprep.subr.mxu0 0.0
        %1577 = vmatpush1.msra.mxu0 0.0
        %1578 = vmatprep.subr.mxu0 0.0
        %1579 = vmatpush1.msra.mxu0 0.0
        %1580 = vmatprep.subr.mxu0 0.0
        %1581 = vmatpush1.msra.mxu0 0.0
        %1582 = vmatprep.subr.mxu0 0.0
        %1583 = vmatpush1.msra.mxu0 0.0
        %1584 = vmatprep.subr.mxu0 0.0
        %1585 = vmatpush1.msra.mxu0 0.0
        %1586 = vmatprep.subr.mxu0 0.0
        %1587 = vmatpush1.msra.mxu0 0.0
        %1588 = vmatprep.subr.mxu0 0.0
        %1589 = vmatpush1.msra.mxu0 0.0
        %1590 = vmatprep.subr.mxu0 0.0
        %1591 = vmatpush1.msra.mxu0 0.0
        %1592 = vmatprep.subr.mxu0 0.0
        %1593 = vmatpush1.msra.mxu0 0.0
        %1594 = vmatprep.subr.mxu0 0.0
        %1595 = vmatpush1.msra.mxu0 0.0
        %1596 = vmatprep.subr.mxu0 0.0
        %1597 = vmatpush1.msra.mxu0 0.0
        %1598 = vmatprep.subr.mxu0 0.0
        %1599 = vmatpush1.msra.mxu0 0.0
        %1600 = vmatprep.subr.mxu0 0.0
        %1601 = vmatpush1.msra.mxu0 0.0
        %1602 = vmatprep.subr.mxu0 0.0
        %1603 = vmatpush1.msra.mxu0 0.0
        %1604 = vmatprep.subr.mxu0 0.0
        %1605 = vmatpush1.msra.mxu0 0.0
        %1606 = vmatprep.subr.mxu0 0.0
        %1607 = vmatpush1.msra.mxu0 0.0
        %1608 = vmatprep.subr.mxu0 0.0
        %1609 = vmatpush1.msra.mxu0 0.0
        %1610 = vmatprep.subr.mxu0 0.0
        %1611 = vmatpush1.msra.mxu0 0.0
        %1612 = vmatprep.subr.mxu0 0.0
        %1613 = vmatpush1.msra.mxu0 0.0
        %1614 = vmatprep.subr.mxu0 0.0
        %1615 = vmatpush1.msra.mxu0 0.0
        %1616 = vmatprep.subr.mxu0 0.0
        %1617 = vmatpush1.msra.mxu0 0.0
        %1618 = vmatprep.subr.mxu0 0.0
        %1619 = vmatpush1.msra.mxu0 0.0
        %1620 = vmatprep.subr.mxu0 0.0
        %1621 = vmatpush1.msra.mxu0 0.0
        %1622 = vmatprep.subr.mxu0 0.0
        %1623 = vmatpush1.msra.mxu0 0.0
        %1624 = vmatprep.subr.mxu0 0.0
        %1625 = vmatpush1.msra.mxu0 0.0
        %1626 = vmatprep.subr.mxu0 0.0
        %1627 = vmatpush1.msra.mxu0 0.0
        %1628 = vmatprep.subr.mxu0 0.0
        %1629 = vmatpush1.msra.mxu0 0.0
        %1630 = vmatprep.mubr.f32.mxu0 0.0
        %1631 = vmatmul.mubr.f32.gmra.mrb[0].mxu0 %v1564
        %v1632 = vpop.f32.mrb[0].mxu0
        %v1633 = vadd.f32 0.0, %v1632
        %v1634 = vpop.f32.mrb[0].mxu0
        %1635 = vdwg.mxu0
        %v1636 = vadd.f32 %v1562, %v1633
        %1637 = vst.msk [vmem:[#allocation2] sm:$0xff] %vm650, %v1636
        // Predicated region
        $region101: #{tpu_custom_call.1} parent=67 // pred_check
          %p1638 = pneg %p607
        $region102: #{tpu_custom_call.1} parent=67 // pred_check_branch
          %1640 = sbr.rel (%p1638) target = $region104
        $region103: #{tpu_custom_call.1} parent=67 // pred_region
          %v1641 = vld [vmem:[#allocation2] sm:$0xff]
          %v1642 = vld [vmem:[%s11] sm:$0x1]
          %v1644 = vlaneseq
          %v1645 = vshrl.u32 %v1644, 7
          %v1646 = vsub.s32 0, %v1645
          %v1647 = vrot.slane %v1642, %v1646
          %v1649 = vadd.f32 %v1641, %v1647
          %1650 = vst.msk [vmem:[%s606] sm:$0xff] %vm650, %v1649
        $region104: #{tpu_custom_call.1} parent=67 // pred_fallthru
          _
        %s1651 = sand.u32 %s341, 1
        %s1652 = scalar_lea.sflag [#allocation5], %s1651
        %s1653 = sand.u32 %s341, 1
        %s1654 = smul.addr %s1653, 8
        %s1655 = scalar_lea.vmem [#allocation15], %s1654
        // Predicated region
        $region105: #{tpu_custom_call.1} parent=67 // pred_check
          %p1656 = pneg %p351
        $region106: #{tpu_custom_call.1} parent=67 // pred_check_branch
          %1658 = sbr.rel (%p1656) target = $region108
        $region107: #{tpu_custom_call.1} parent=67 // pred_region
          %s1660 = ssub.s32 128, 128
          %1661 = vsyncadd %s1652, %s1660
          %s1662 = sadd.s32 %s42, %s41
          %s1663 = smul.addr %s1662, 128
          %s1664 = scalar_lea.hbm %s12, %s1663
          %s1666 = sshll.u32 %s1655, 4
          %s1667 = int_to_ptr.vmem [resolvable:$true] %s1666
          %1669 = dma.vmem_to_hbm [thread:$0]  %s1667, 128, %s1664, %s1652
        $region108: #{tpu_custom_call.1} parent=67 // pred_fallthru
          _
      $region68: #{tpu_custom_call.1} parent=5 // pred_fallthru
        _
      %p1670 = scmp.le.s32.totalorder 2, %s31
      // Predicated region
      $region109: #{tpu_custom_call.1} parent=5 // pred_check
        %p1671 = pneg %p1670
      $region110: #{tpu_custom_call.1} parent=5 // pred_check_branch
        %1673 = sbr.rel (%p1671) target = $region112
      $region111: #{tpu_custom_call.1} parent=5 // pred_region
        %s1674 = ssub.s32 %s31, 2
        // Predicated region
        $region113: #{tpu_custom_call.1} parent=111 // pred_check
          %p1675 = pneg %p357
        $region114: #{tpu_custom_call.1} parent=111 // pred_check_branch
          %1677 = sbr.rel (%p1675) target = $region116
        $region115: #{tpu_custom_call.1} parent=111 // pred_region
          %s1678 = sand.u32 %s342, 1
          %s1679 = scalar_lea.sflag [#allocation5], %s1678
          %s1680 = sand.u32 %s342, 1
          %s1681 = smul.addr %s1680, 8
          %s1682 = scalar_lea.vmem [#allocation15], %s1681
          %1683 = dma.done %s1679, 128
        $region116: #{tpu_custom_call.1} parent=111 // pred_fallthru
          _
      $region112: #{tpu_custom_call.1} parent=5 // pred_fallthru
        _
    $region6: #{tpu_custom_call.1} parent=1 // loop_footer
      %s35 = sadd.s32 1, %s31
    $region7: #{tpu_custom_call.1} parent=1 // loop_footer_branch
      %30 = sbr.rel target = $region3
    $region8: #{tpu_custom_call.1} parent=1 // loop_exit
      _
    %1684 = vsyncpa [#allocation4], 1
    %s1685 = scalar_lea.sflag [#allocation4], 1
    %1686 = vsyncpa %s1685, 1
    %1687 = vsyncpa [#allocation7], 1
    %s1688 = scalar_lea.sflag [#allocation7], 1
    %1689 = vsyncpa %s1688, 1
    %1690 = vsyncpa [#allocation10], 1
    %s1691 = scalar_lea.sflag [#allocation10], 1
    %1692 = vsyncpa %s1691, 1
    %1693 = vsyncpa [#allocation13], 1
    %1694 = vsyncpa [#allocation5], 1
    %s1695 = scalar_lea.sflag [#allocation5], 1
    %1696 = vsyncpa %s1695, 1

</llo_original>
